<compile_context>
chip_gen: v7x
topology: tpu7x:2x2x1
jax: 0.10.0
libtpu: 0.0.40
codegen_flags: <defaults>
</compile_context>

<pallas_src>
import functools

import jax
import jax.numpy as jnp
from jax.experimental import pallas as pl
from jax.experimental.pallas import tpu as pltpu

EPS = 1e-5  # nn.InstanceNorm3d default eps


def _se_norm_conv_kernel(x_ref, wc_ref, bc_ref, w1_ref, b1_ref, w2_ref, b2_ref,
                         o_ref, acc_ref, c_ref, ss_ref, *,
                         cout, s_valid, ts, x_resident, has_pad):
    p = pl.program_id(1)          # 0 = stats pass, 1 = apply pass
    si = pl.program_id(2)         # spatial tile index
    n_s = pl.num_programs(2)

    # x tile: sliced out of the batch-resident VMEM block, or the streamed per-tile block.
    if x_resident:
        start = pl.multiple_of(si * ts, 128)
        x = x_ref[0, :, pl.ds(start, ts)]                                # [Cin, TS]
    else:
        x = x_ref[0]                                                     # [Cin, TS]

    # 1x1x1 Conv3d + bias + ReLU, recomputed in both passes (Cin tiny -> cheaper than
    # staging y).  Precision is deliberately the TPU default (bf16 multiply, f32 acc);
    # the f32-sensitive statistics below are accumulated on the VPU in full f32.
    y = jnp.dot(wc_ref[...], x, preferred_element_type=jnp.float32,
                precision=jax.lax.Precision.DEFAULT)                     # [Cout, TS]
    y = jnp.maximum(y + bc_ref[...], 0.0)                                # (Cout,1) lane splat

    @pl.when(p == 0)
    def _stats_pass():
        @pl.when(si == 0)
        def _init():
            # Shift constant for numerically-stable shifted variance (first-tile mean;
            # exactness does not matter, any constant gives the exact mean/var below).
            c_ref[...] = jnp.sum(y, axis=1, keepdims=True) * (1.0 / ts)
            acc_ref[...] = jnp.zeros_like(acc_ref)

        d = y - c_ref[...]                                               # [Cout, TS]
        dd = d * d
        if has_pad:
            # Zero-padded x columns give y = relu(bias) there; mask them out of the stats.
            col = si * ts + jax.lax.broadcasted_iota(jnp.int32, d.shape, 1)
            valid = (col < s_valid).astype(jnp.float32)
            d = d * valid
            dd = dd * valid
        # f32 VPU vreg adds + one XLU cross-lane reduce per tile (no MXU, no concatenate).
        acc_ref[:cout] += jnp.sum(d, axis=1, keepdims=True)
        acc_ref[cout:] += jnp.sum(dd, axis=1, keepdims=True)

        @pl.when(si == n_s - 1)
        def _finalize():
            inv_s = 1.0 / s_valid
            m1 = acc_ref[:cout] * inv_s                                  # mean - c
            mean = c_ref[...] + m1                                       # [Cout, 1]
            var = jnp.maximum(acc_ref[cout:] * inv_s - m1 * m1, 0.0)     # Var(y-c) == Var(y)

            # SE excitation: gamma & beta branches fused into two small matmuls.
            h = jnp.maximum(
                jnp.dot(w1_ref[...], mean, preferred_element_type=jnp.float32)
                + b1_ref[...], 0.0)                                      # [2*cr, 1]
            pre = jnp.dot(w2_ref[...], h, preferred_element_type=jnp.float32) + b2_ref[...]
            gamma = jax.nn.sigmoid(pre[:cout])                           # [Cout, 1]
            beta = jnp.tanh(pre[cout:])                                  # [Cout, 1]

            # out = gamma*(y-mean)*inv_std + beta  ==  y*scale + shift
            scale = gamma * jax.lax.rsqrt(var + EPS)
            ss_ref[:cout] = scale
            ss_ref[cout:] = beta - mean * scale

    @pl.when(p == 1)
    def _apply_pass():
        # (Cout,1) scale/shift lane-broadcast against the [Cout,TS] tile (near-free).
        o_ref[0] = (y * ss_ref[:cout] + ss_ref[cout:]).astype(o_ref.dtype)


def _vmem_limit_bytes():
    """Per-generation scoped-VMEM limit with headroom (64 MiB v7x vs 128 MiB v5e/v6e)."""
    try:
        cap = int(pltpu.get_tpu_info().vmem_capacity_bytes)
    except Exception:
        cap = 64 * 1024 * 1024
    return max(32 * 1024 * 1024, min(int(cap * 0.6), 100 * 1024 * 1024))


def fast_smooth_senorm_conv3d(x_ncdhw, packed_params, *, ts_target=32768,
                              allow_resident=True):
    """x_ncdhw: [B, Cin, D, H, W] float32. Returns [B, Cout, D, H, W] float32."""
    wc, bc, w1f, b1f, w2f, b2f = packed_params
    B, Cin, D, H, W = x_ncdhw.shape
    Cout = wc.shape[0]
    S = D * H * W

    # NCDHW -> [B, Cin, S]: free reshape (channels-first, spatial on the lane axis).
    x = x_ncdhw.reshape(B, Cin, S)
    bc2 = bc.reshape(Cout, 1)

    vmem_limit = _vmem_limit_bytes()
    plan_budget = int(vmem_limit * 0.85)

    # ---- tile plan: 128-aligned S tiles, padding S up to a tile multiple ----
    LANE = 128
    rup = lambda v, m: ((v + m - 1) // m) * m
    if S <= ts_target:
        ts = rup(S, LANE)                       # single tile for small volumes
    else:
        ts = max(LANE, (ts_target // LANE) * LANE)
    # Shrink ts if even the streaming (per-tile) mode would not fit the VMEM budget.
    while ts > LANE and 4 * (2 * Cin * ts + 2 * Cout * ts) > plan_budget:
        ts = max(LANE, ((ts // 2) // LANE) * LANE)

    S_pad = rup(S, ts)
    n_s = S_pad // ts
    has_pad = S_pad != S

    # Keep x for a whole batch resident in VMEM across both passes when it fits:
    # drops per-element HBM traffic from 2*Cin reads + Cout writes to Cin + Cout.
    resident_bytes = 4 * (2 * Cin * S_pad + 2 * Cout * ts)
    x_resident = bool(allow_resident) and resident_bytes <= plan_budget

    if has_pad:
        x = jnp.pad(x, ((0, 0), (0, 0), (0, S_pad - S)))

    if x_resident:
        x_spec = pl.BlockSpec((1, Cin, S_pad), lambda b, p, si: (b, 0, 0))
    else:
        x_spec = pl.BlockSpec((1, Cin, ts), lambda b, p, si: (b, 0, si))

    full = lambda a: pl.BlockSpec(a.shape, lambda b, p, si: (0,) * a.ndim)
    kernel = functools.partial(_se_norm_conv_kernel, cout=Cout, s_valid=S, ts=ts,
                               x_resident=x_resident, has_pad=has_pad)

    out = pl.pallas_call(
        kernel,
        out_shape=jax.ShapeDtypeStruct((B, Cout, S_pad), x.dtype),
        grid_spec=pltpu.PrefetchScalarGridSpec(
            num_scalar_prefetch=0,
            grid=(B, 2, n_s),            # (batch, pass: stats/apply, S tile)
            in_specs=[
                x_spec,
                full(wc), full(bc2), full(w1f), full(b1f), full(w2f), full(b2f),
            ],
            # Stats pass parks on S-block 0 and never writes it; the apply pass fully
            # overwrites every block before its index advances -> exactly one writeback
            # per block (the wrapper slices off any padded columns afterwards).
            out_specs=pl.BlockSpec((1, Cout, ts), lambda b, p, si: (b, 0, p * si)),
            scratch_shapes=[
                pltpu.VMEM((2 * Cout, 1), jnp.float32),    # [sum(y-c); sum((y-c)^2)]
                pltpu.VMEM((Cout, 1), jnp.float32),        # variance shift constant c
                pltpu.VMEM((2 * Cout, 1), jnp.float32),    # [scale; shift]
            ],
        ),
        compiler_params=pltpu.CompilerParams(
            dimension_semantics=("parallel", "arbitrary", "arbitrary"),
            vmem_limit_bytes=vmem_limit,
        ),
    )(x, wc, bc2, w1f, b1f, w2f, b2f)

    if has_pad:
        out = out[:, :, :S]
    return out.reshape(B, Cout, D, H, W)


# ----------------------------- parameters (PyTorch layout) -----------------------------

def init_torch_params(key, cin, cout, reduction=2):
    """Synthetic params in PyTorch layout (1x1x1 conv kernels squeezed)."""
    cr = cout // reduction
    ks = jax.random.split(key, 10)
    n = lambda k, shp: 0.2 * jax.random.normal(k, shp, jnp.float32)
    wc = n(ks[0], (cout, cin))                     # conv.weight[o, i, 0, 0, 0]
    bc = n(ks[1], (cout,))
    w1g, b1g = n(ks[2], (cr, cout)), n(ks[3], (cr,))      # gamma branch conv1
    w2g, b2g = n(ks[4], (cout, cr)), n(ks[5], (cout,))    # gamma branch conv2
    w1b, b1b = n(ks[6], (cr, cout)), n(ks[7], (cr,))      # beta  branch conv1
    w2b, b2b = n(ks[8], (cout, cr)), n(ks[9], (cout,))    # beta  branch conv2
    return (wc, bc, w1g, b1g, w2g, b2g, w1b, b1b, w2b, b2b)


def pack_params(wc, bc, w1g, b1g, w2g, b2g, w1b, b1b, w2b, b2b):
    """Fuse the two SE branches: one [2cr,Cout] matmul + one block-diagonal [2Cout,2cr]."""
    cout, cr = w2g.shape
    w1f = jnp.concatenate([w1g, w1b], axis=0)                              # [2cr, Cout]
    b1f = jnp.concatenate([b1g, b1b], axis=0).reshape(2 * cr, 1)
    z = jnp.zeros((cout, cr), w2g.dtype)
    w2f = jnp.concatenate([jnp.concatenate([w2g, z], axis=1),
                           jnp.concatenate([z, w2b], axis=1)], axis=0)     # [2Cout, 2cr]
    b2f = jnp.concatenate([b2g, b2b], axis=0).reshape(2 * cout, 1)
    return (wc, bc, w1f, b1f, w2f, b2f)


# ----------------------------------- pure-JAX reference --------------------------------

def reference(x_ncdhw, torch_params):
    wc, bc, w1g, b1g, w2g, b2g, w1b, b1b, w2b, b2b = torch_params
    B, Cin, D, H, W = x_ncdhw.shape
    xf = x_ncdhw.reshape(B, Cin, -1)
    y = jnp.maximum(jnp.einsum("oc,bcs->bos", wc, xf) + bc[None, :, None], 0.0)
    mean = jnp.mean(y, axis=2, keepdims=True)
    var = jnp.mean((y - mean) ** 2, axis=2, keepdims=True)     # biased (InstanceNorm3d)
    m = mean[..., 0]
    hg = jnp.maximum(jnp.einsum("rc,bc->br", w1g, m) + b1g, 0.0)
    gamma = jax.nn.sigmoid(jnp.einsum("cr,br->bc", w2g, hg) + b2g)
    hb = jnp.maximum(jnp.einsum("rc,bc->br", w1b, m) + b1b, 0.0)
    beta = jnp.tanh(jnp.einsum("cr,br->bc", w2b, hb) + b2b)
    out = gamma[..., None] * (y - mean) / jnp.sqrt(var + EPS) + beta[..., None]
    return out.reshape(B, wc.shape[0], D, H, W)


if __name__ == "__main__":
    # FastSmoothSeNormConv3d(in_channels=4, out_channels=8, reduction=2,
    #                        kernel_size=1, stride=1, padding=0)
    B, Cin, Cout = 2, 4, 8
    key = jax.random.PRNGKey(0)
    kx, kp, kx2 = jax.random.split(key, 3)
    torch_params = init_torch_params(kp, Cin, Cout, reduction=2)
    params = pack_params(*torch_params)

    def check(x, **kw):
        out = jax.block_until_ready(fast_smooth_senorm_conv3d(x, params, **kw))
        ref = reference(x, torch_params)
        assert out.shape == ref.shape
        assert bool(jnp.all(jnp.isfinite(out)))
        err = float(jnp.max(jnp.abs(out - ref)))
        assert err < 1e-3, f"max abs error vs reference: {err}"

    # 1) Default plan: single S tile, x resident in VMEM across both passes.
    x = jax.random.normal(kx, (B, Cin, 16, 16, 16), jnp.float32)
    check(x)

    # 2) Forced multi-tile streaming path (exercises tiled stats accumulation + 2nd x read).
    check(x, ts_target=512, allow_resident=False)

    # 3) Non-128-aligned volume (exercises lane padding + stats masking).
    x_odd = jax.random.normal(kx2, (B, Cin, 7, 9, 5), jnp.float32)
    check(x_odd)

    print("KERNEL_OK")
</pallas_src>

<mosaic_0001>
module attributes {stable_mosaic.version = 11 : i64} {
  func.func @_se_norm_conv_kernel(%arg0: i32, %arg1: i32, %arg2: i32, %arg3: memref<1x4x4096xf32, #tpu.memory_space<vmem>>, %arg4: memref<8x4xf32, #tpu.memory_space<vmem>>, %arg5: memref<8x1xf32, #tpu.memory_space<vmem>>, %arg6: memref<8x8xf32, #tpu.memory_space<vmem>>, %arg7: memref<8x1xf32, #tpu.memory_space<vmem>>, %arg8: memref<16x8xf32, #tpu.memory_space<vmem>>, %arg9: memref<16x1xf32, #tpu.memory_space<vmem>>, %arg10: memref<1x8x4096xf32, #tpu.memory_space<vmem>>, %arg11: memref<16x1xf32, #tpu.memory_space<vmem>>, %arg12: memref<8x1xf32, #tpu.memory_space<vmem>>, %arg13: memref<16x1xf32, #tpu.memory_space<vmem>>) attributes {dimension_semantics = [#tpu.dimension_semantics<parallel>, #tpu.dimension_semantics<arbitrary>, #tpu.dimension_semantics<arbitrary>], iteration_bounds = array<i64: 2, 2, 1>, scalar_prefetch = 0 : i64, scratch_operands = 3 : i64, tpu.core_type = #tpu.core_type<tc>, window_params = [{transform_indices = @transform_0, window_bounds = array<i64: 1, 4, 4096>}, {pipeline_mode = #tpu.pipeline_mode<synchronous>, transform_indices = @transform_1, window_bounds = array<i64: 8, 4>}, {pipeline_mode = #tpu.pipeline_mode<synchronous>, transform_indices = @transform_2, window_bounds = array<i64: 8, 1>}, {pipeline_mode = #tpu.pipeline_mode<synchronous>, transform_indices = @transform_3, window_bounds = array<i64: 8, 8>}, {pipeline_mode = #tpu.pipeline_mode<synchronous>, transform_indices = @transform_4, window_bounds = array<i64: 8, 1>}, {pipeline_mode = #tpu.pipeline_mode<synchronous>, transform_indices = @transform_5, window_bounds = array<i64: 16, 8>}, {pipeline_mode = #tpu.pipeline_mode<synchronous>, transform_indices = @transform_6, window_bounds = array<i64: 16, 1>}, {transform_indices = @transform_7, window_bounds = array<i64: 1, 8, 4096>}]} {
    %c4096_i32 = arith.constant 4096 : i32
    %0 = arith.muli %arg2, %c4096_i32 : i32
    %1 = tpu.assume_multiple %0, 128 : i32
    %c0 = arith.constant 0 : index
    %c0_0 = arith.constant 0 : index
    %2 = arith.index_cast %1 : i32 to index
    %3 = vector.load %arg3[%c0, %c0_0, %2] : memref<1x4x4096xf32, #tpu.memory_space<vmem>>, vector<1x4x4096xf32>
    %4 = vector.shape_cast %3 : vector<1x4x4096xf32> to vector<4x4096xf32>
    %c0_1 = arith.constant 0 : index
    %c0_2 = arith.constant 0 : index
    %5 = vector.load %arg4[%c0_1, %c0_2] : memref<8x4xf32, #tpu.memory_space<vmem>>, vector<8x4xf32>
    %cst = arith.constant dense<0.000000e+00> : vector<8x4096xf32>
    %6 = tpu.matmul %5, %4, %cst {dimension_numbers = #tpu.dot_dimension_numbers<[1], [0], [0], [1], [0, 0, 1, 1], [], []>} : vector<8x4xf32>, vector<4x4096xf32>, vector<8x4096xf32> -> vector<8x4096xf32>
    %c0_3 = arith.constant 0 : index
    %c0_4 = arith.constant 0 : index
    %7 = vector.load %arg5[%c0_3, %c0_4] : memref<8x1xf32, #tpu.memory_space<vmem>>, vector<8x1xf32>
    %8 = vector.broadcast %7 : vector<8x1xf32> to vector<8x4096xf32>
    %9 = arith.addf %6, %8 : vector<8x4096xf32>
    %cst_5 = arith.constant 0.000000e+00 : f32
    %10 = vector.broadcast %cst_5 : f32 to vector<8x4096xf32>
    %11 = arith.maximumf %9, %10 : vector<8x4096xf32>
    %c0_i32 = arith.constant 0 : i32
    %12 = arith.cmpi eq, %arg1, %c0_i32 : i32
    %13 = arith.extui %12 : i1 to i32
    %c0_i32_6 = arith.constant 0 : i32
    %14 = arith.cmpi ne, %13, %c0_i32_6 : i32
    scf.if %14 {
      %c0_i32_8 = arith.constant 0 : i32
      %18 = arith.cmpi eq, %arg2, %c0_i32_8 : i32
      %19 = arith.extui %18 : i1 to i32
      %c0_i32_9 = arith.constant 0 : i32
      %20 = arith.cmpi ne, %19, %c0_i32_9 : i32
      scf.if %20 {
        %cst_23 = arith.constant dense<0.000000e+00> : vector<8xf32>
        %38 = vector.multi_reduction <add>, %11, %cst_23 [1] : vector<8x4096xf32> to vector<8xf32>
        %39 = vector.shape_cast %38 : vector<8xf32> to vector<8x1xf32>
        %cst_24 = arith.constant 2.44140625E-4 : f32
        %40 = vector.broadcast %cst_24 : f32 to vector<8x1xf32>
        %41 = arith.mulf %39, %40 : vector<8x1xf32>
        %c0_25 = arith.constant 0 : index
        %c0_26 = arith.constant 0 : index
        %42 = vector.load %arg12[%c0_25, %c0_26] : memref<8x1xf32, #tpu.memory_space<vmem>>, vector<8x1xf32>
        tpu.vector_store %arg12[%c0_25, %c0_26], %41 {strides = array<i32>} : memref<8x1xf32, #tpu.memory_space<vmem>>, vector<8x1xf32>,
        %cst_27 = arith.constant 0.000000e+00 : f32
        %43 = vector.broadcast %cst_27 : f32 to vector<16x1xf32>
        %c0_28 = arith.constant 0 : index
        %c0_29 = arith.constant 0 : index
        %44 = vector.load %arg11[%c0_28, %c0_29] : memref<16x1xf32, #tpu.memory_space<vmem>>, vector<16x1xf32>
        tpu.vector_store %arg11[%c0_28, %c0_29], %43 {strides = array<i32>} : memref<16x1xf32, #tpu.memory_space<vmem>>, vector<16x1xf32>,
      } else {
      }
      %c0_10 = arith.constant 0 : index
      %c0_11 = arith.constant 0 : index
      %21 = vector.load %arg12[%c0_10, %c0_11] : memref<8x1xf32, #tpu.memory_space<vmem>>, vector<8x1xf32>
      %22 = vector.broadcast %21 : vector<8x1xf32> to vector<8x4096xf32>
      %23 = arith.subf %11, %22 : vector<8x4096xf32>
      %24 = arith.mulf %23, %23 : vector<8x4096xf32>
      %c0_12 = arith.constant 0 : index
      %c0_13 = arith.constant 0 : index
      %25 = vector.load %arg11[%c0_12, %c0_13] : memref<16x1xf32, #tpu.memory_space<vmem>>, vector<8x1xf32>
      %cst_14 = arith.constant dense<0.000000e+00> : vector<8xf32>
      %26 = vector.multi_reduction <add>, %23, %cst_14 [1] : vector<8x4096xf32> to vector<8xf32>
      %27 = vector.shape_cast %26 : vector<8xf32> to vector<8x1xf32>
      %28 = arith.addf %25, %27 : vector<8x1xf32>
      %c0_15 = arith.constant 0 : index
      %c0_16 = arith.constant 0 : index
      %29 = vector.load %arg11[%c0_15, %c0_16] : memref<16x1xf32, #tpu.memory_space<vmem>>, vector<8x1xf32>
      tpu.vector_store %arg11[%c0_15, %c0_16], %28 {strides = array<i32>} : memref<16x1xf32, #tpu.memory_space<vmem>>, vector<8x1xf32>,
      %c8 = arith.constant 8 : index
      %c0_17 = arith.constant 0 : index
      %30 = vector.load %arg11[%c8, %c0_17] : memref<16x1xf32, #tpu.memory_space<vmem>>, vector<8x1xf32>
      %cst_18 = arith.constant dense<0.000000e+00> : vector<8xf32>
      %31 = vector.multi_reduction <add>, %24, %cst_18 [1] : vector<8x4096xf32> to vector<8xf32>
      %32 = vector.shape_cast %31 : vector<8xf32> to vector<8x1xf32>
      %33 = arith.addf %30, %32 : vector<8x1xf32>
      %c8_19 = arith.constant 8 : index
      %c0_20 = arith.constant 0 : index
      %34 = vector.load %arg11[%c8_19, %c0_20] : memref<16x1xf32, #tpu.memory_space<vmem>>, vector<8x1xf32>
      tpu.vector_store %arg11[%c8_19, %c0_20], %33 {strides = array<i32>} : memref<16x1xf32, #tpu.memory_space<vmem>>, vector<8x1xf32>,
      %c0_i32_21 = arith.constant 0 : i32
      %35 = arith.cmpi eq, %arg2, %c0_i32_21 : i32
      %36 = arith.extui %35 : i1 to i32
      %c0_i32_22 = arith.constant 0 : i32
      %37 = arith.cmpi ne, %36, %c0_i32_22 : i32
      scf.if %37 {
        %c0_23 = arith.constant 0 : index
        %c0_24 = arith.constant 0 : index
        %38 = vector.load %arg11[%c0_23, %c0_24] : memref<16x1xf32, #tpu.memory_space<vmem>>, vector<8x1xf32>
        %cst_25 = arith.constant 2.44140625E-4 : f32
        %39 = vector.broadcast %cst_25 : f32 to vector<8x1xf32>
        %40 = arith.mulf %38, %39 : vector<8x1xf32>
        %c0_26 = arith.constant 0 : index
        %c0_27 = arith.constant 0 : index
        %41 = vector.load %arg12[%c0_26, %c0_27] : memref<8x1xf32, #tpu.memory_space<vmem>>, vector<8x1xf32>
        %42 = arith.addf %41, %40 : vector<8x1xf32>
        %c8_28 = arith.constant 8 : index
        %c0_29 = arith.constant 0 : index
        %43 = vector.load %arg11[%c8_28, %c0_29] : memref<16x1xf32, #tpu.memory_space<vmem>>, vector<8x1xf32>
        %cst_30 = arith.constant 2.44140625E-4 : f32
        %44 = vector.broadcast %cst_30 : f32 to vector<8x1xf32>
        %45 = arith.mulf %43, %44 : vector<8x1xf32>
        %46 = arith.mulf %40, %40 : vector<8x1xf32>
        %47 = arith.subf %45, %46 : vector<8x1xf32>
        %cst_31 = arith.constant 0.000000e+00 : f32
        %48 = vector.broadcast %cst_31 : f32 to vector<8x1xf32>
        %49 = arith.maximumf %47, %48 : vector<8x1xf32>
        %c0_32 = arith.constant 0 : index
        %c0_33 = arith.constant 0 : index
        %50 = vector.load %arg6[%c0_32, %c0_33] : memref<8x8xf32, #tpu.memory_space<vmem>>, vector<8x8xf32>
        %cst_34 = arith.constant dense<0.000000e+00> : vector<8x1xf32>
        %51 = tpu.matmul %50, %42, %cst_34 {dimension_numbers = #tpu.dot_dimension_numbers<[1], [0], [0], [1], [0, 0, 1, 1], [], []>} : vector<8x8xf32>, vector<8x1xf32>, vector<8x1xf32> -> vector<8x1xf32>
        %c0_35 = arith.constant 0 : index
        %c0_36 = arith.constant 0 : index
        %52 = vector.load %arg7[%c0_35, %c0_36] : memref<8x1xf32, #tpu.memory_space<vmem>>, vector<8x1xf32>
        %53 = arith.addf %51, %52 : vector<8x1xf32>
        %cst_37 = arith.constant 0.000000e+00 : f32
        %54 = vector.broadcast %cst_37 : f32 to vector<8x1xf32>
        %55 = arith.maximumf %53, %54 : vector<8x1xf32>
        %c0_38 = arith.constant 0 : index
        %c0_39 = arith.constant 0 : index
        %56 = vector.load %arg8[%c0_38, %c0_39] : memref<16x8xf32, #tpu.memory_space<vmem>>, vector<16x8xf32>
        %cst_40 = arith.constant dense<0.000000e+00> : vector<16x1xf32>
        %57 = tpu.matmul %56, %55, %cst_40 {dimension_numbers = #tpu.dot_dimension_numbers<[1], [0], [0], [1], [0, 0, 1, 1], [], []>} : vector<16x8xf32>, vector<8x1xf32>, vector<16x1xf32> -> vector<16x1xf32>
        %c0_41 = arith.constant 0 : index
        %c0_42 = arith.constant 0 : index
        %58 = vector.load %arg9[%c0_41, %c0_42] : memref<16x1xf32, #tpu.memory_space<vmem>>, vector<16x1xf32>
        %59 = arith.addf %57, %58 : vector<16x1xf32>
        %60 = vector.extract_strided_slice %59 {offsets = [0, 0], sizes = [8, 1], strides = [1, 1]} : vector<16x1xf32> to vector<8x1xf32>
        %61 = arith.negf %60 : vector<8x1xf32>
        %62 = math.exp %61 : vector<8x1xf32>
        %cst_43 = arith.constant 1.000000e+00 : f32
        %63 = vector.broadcast %cst_43 : f32 to vector<8x1xf32>
        %64 = arith.addf %63, %62 : vector<8x1xf32>
        %65 = arith.divf %63, %64 : vector<8x1xf32>
        %66 = vector.extract_strided_slice %59 {offsets = [8, 0], sizes = [8, 1], strides = [1, 1]} : vector<16x1xf32> to vector<8x1xf32>
        %67 = math.tanh %66 : vector<8x1xf32>
        %cst_44 = arith.constant 9.99999974E-6 : f32
        %68 = vector.broadcast %cst_44 : f32 to vector<8x1xf32>
        %69 = arith.addf %49, %68 : vector<8x1xf32>
        %70 = math.rsqrt %69 : vector<8x1xf32>
        %71 = arith.mulf %65, %70 : vector<8x1xf32>
        %c0_45 = arith.constant 0 : index
        %c0_46 = arith.constant 0 : index
        %72 = vector.load %arg13[%c0_45, %c0_46] : memref<16x1xf32, #tpu.memory_space<vmem>>, vector<8x1xf32>
        tpu.vector_store %arg13[%c0_45, %c0_46], %71 {strides = array<i32>} : memref<16x1xf32, #tpu.memory_space<vmem>>, vector<8x1xf32>,
        %73 = arith.mulf %42, %71 : vector<8x1xf32>
        %74 = arith.subf %67, %73 : vector<8x1xf32>
        %c8_47 = arith.constant 8 : index
        %c0_48 = arith.constant 0 : index
        %75 = vector.load %arg13[%c8_47, %c0_48] : memref<16x1xf32, #tpu.memory_space<vmem>>, vector<8x1xf32>
        tpu.vector_store %arg13[%c8_47, %c0_48], %74 {strides = array<i32>} : memref<16x1xf32, #tpu.memory_space<vmem>>, vector<8x1xf32>,
      } else {
      }
    } else {
    }
    %c1_i32 = arith.constant 1 : i32
    %15 = arith.cmpi eq, %arg1, %c1_i32 : i32
    %16 = arith.extui %15 : i1 to i32
    %c0_i32_7 = arith.constant 0 : i32
    %17 = arith.cmpi ne, %16, %c0_i32_7 : i32
    scf.if %17 {
      %c0_8 = arith.constant 0 : index
      %c0_9 = arith.constant 0 : index
      %18 = vector.load %arg13[%c0_8, %c0_9] : memref<16x1xf32, #tpu.memory_space<vmem>>, vector<8x1xf32>
      %19 = vector.broadcast %18 : vector<8x1xf32> to vector<8x4096xf32>
      %20 = arith.mulf %11, %19 : vector<8x4096xf32>
      %c8 = arith.constant 8 : index
      %c0_10 = arith.constant 0 : index
      %21 = vector.load %arg13[%c8, %c0_10] : memref<16x1xf32, #tpu.memory_space<vmem>>, vector<8x1xf32>
      %22 = vector.broadcast %21 : vector<8x1xf32> to vector<8x4096xf32>
      %23 = arith.addf %20, %22 : vector<8x4096xf32>
      %c0_11 = arith.constant 0 : index
      %c0_12 = arith.constant 0 : index
      %c0_13 = arith.constant 0 : index
      %24 = vector.load %arg10[%c0_11, %c0_12, %c0_13] : memref<1x8x4096xf32, #tpu.memory_space<vmem>>, vector<1x8x4096xf32>
      %25 = vector.shape_cast %24 : vector<1x8x4096xf32> to vector<8x4096xf32>
      %26 = vector.shape_cast %23 : vector<8x4096xf32> to vector<1x8x4096xf32>
      tpu.vector_store %arg10[%c0_11, %c0_12, %c0_13], %26 {strides = array<i32>} : memref<1x8x4096xf32, #tpu.memory_space<vmem>>, vector<1x8x4096xf32>,
    } else {
    }
    return
  }
  func.func @transform_0(%arg0: i32, %arg1: i32, %arg2: i32) -> (i32, i32, i32) {
    %c0_i32 = arith.constant 0 : i32
    %c0_i32_0 = arith.constant 0 : i32
    %c0_i32_1 = arith.constant 0 : i32
    return %arg0, %c0_i32, %c0_i32_0 : i32, i32, i32
  }
  func.func @transform_1(%arg0: i32, %arg1: i32, %arg2: i32) -> (i32, i32) {
    %c0_i32 = arith.constant 0 : i32
    %c0_i32_0 = arith.constant 0 : i32
    %c0_i32_1 = arith.constant 0 : i32
    return %c0_i32, %c0_i32_0 : i32, i32
  }
  func.func @transform_2(%arg0: i32, %arg1: i32, %arg2: i32) -> (i32, i32) {
    %c0_i32 = arith.constant 0 : i32
    %c0_i32_0 = arith.constant 0 : i32
    %c0_i32_1 = arith.constant 0 : i32
    return %c0_i32, %c0_i32_0 : i32, i32
  }
  func.func @transform_3(%arg0: i32, %arg1: i32, %arg2: i32) -> (i32, i32) {
    %c0_i32 = arith.constant 0 : i32
    %c0_i32_0 = arith.constant 0 : i32
    %c0_i32_1 = arith.constant 0 : i32
    return %c0_i32, %c0_i32_0 : i32, i32
  }
  func.func @transform_4(%arg0: i32, %arg1: i32, %arg2: i32) -> (i32, i32) {
    %c0_i32 = arith.constant 0 : i32
    %c0_i32_0 = arith.constant 0 : i32
    %c0_i32_1 = arith.constant 0 : i32
    return %c0_i32, %c0_i32_0 : i32, i32
  }
  func.func @transform_5(%arg0: i32, %arg1: i32, %arg2: i32) -> (i32, i32) {
    %c0_i32 = arith.constant 0 : i32
    %c0_i32_0 = arith.constant 0 : i32
    %c0_i32_1 = arith.constant 0 : i32
    return %c0_i32, %c0_i32_0 : i32, i32
  }
  func.func @transform_6(%arg0: i32, %arg1: i32, %arg2: i32) -> (i32, i32) {
    %c0_i32 = arith.constant 0 : i32
    %c0_i32_0 = arith.constant 0 : i32
    %c0_i32_1 = arith.constant 0 : i32
    return %c0_i32, %c0_i32_0 : i32, i32
  }
  func.func @transform_7(%arg0: i32, %arg1: i32, %arg2: i32) -> (i32, i32, i32) {
    %0 = arith.muli %arg1, %arg2 : i32
    %c0_i32 = arith.constant 0 : i32
    %c0_i32_0 = arith.constant 0 : i32
    return %arg0, %c0_i32, %0 : i32, i32, i32
  }
}

</mosaic_0001>

<llo_original>
// kernel: tpu_custom_call.1
$region0: #{tpu_custom_call.1}
  #allocation0 [shape = 'u32[]', space=smem, size = 0x4, offset = 0x4, fixed_abs, tag = 'smem constant byte address 0x4 - core index']
  #allocation1 [shape = 'u32[144,128]{1,0:T(1,128)}', space=vmem, size = 0x12000, scoped, tag = 'internal scratch']
  #allocation2 [shape = 'f32[16,1]{1,0:T(8,128)}', space=vmem, size = 0x2000, scoped, tag = 'scratch operand']
  #allocation3 [shape = 'f32[8,1]{1,0:T(8,128)}', space=vmem, size = 0x1000, scoped, tag = 'scratch operand']
  #allocation4 [shape = 'f32[16,1]{1,0:T(8,128)}', space=vmem, size = 0x2000, scoped, tag = 'scratch operand']
  %s0 = inlined_call_operand.hbm [shape: f32[2,4,4096], index: 0, kind: input, shape index: {}]
  %s1 = inlined_call_operand.vmem [shape: f32[8,4], index: 1, kind: input, shape index: {}]
  %s2 = inlined_call_operand.vmem [shape: f32[8,1], index: 2, kind: input, shape index: {}]
  %s3 = inlined_call_operand.vmem [shape: f32[8,8], index: 3, kind: input, shape index: {}]
  %s4 = inlined_call_operand.vmem [shape: f32[8,1], index: 4, kind: input, shape index: {}]
  %s5 = inlined_call_operand.vmem [shape: f32[16,8], index: 5, kind: input, shape index: {}]
  %s6 = inlined_call_operand.vmem [shape: f32[16,1], index: 6, kind: input, shape index: {}]
  %s7 = inlined_call_operand.hbm [shape: f32[2,8,4096], index: 7, kind: output, shape index: {}]
  %s8 = sld [smem:[#allocation0]]
  $region81: #{tpu_custom_call.1} parent=0
    _
  %s10 = ssub.s32 1, %s8
  %s11 = scalar_select 0, %s10, %s8
  $region1: #{tpu_custom_call.1} parent=0
    #allocation5 [shape = 'u8[131072]{0}', space=vmem, size = 0x20000, scoped, tag = 'input window, operand 0']
    #allocation6 [shape = 's32[2]{0}', space=sflag, size = 0x8, scoped, tag = 'scoped memory for tpu_custom_call.1']
    #allocation7 [shape = 's32[2]{0}', space=sflag, size = 0x8, scoped, tag = 'scoped memory for tpu_custom_call.1']
    #allocation8 [shape = 'u8[262144]{0}', space=vmem, size = 0x40000, scoped, tag = 'output window, operand 0']
    %12 = vsyncpa [#allocation6], 0
    %s13 = scalar_lea.sflag [#allocation6], 1
    %14 = vsyncpa %s13, 0
    %15 = vsyncpa [#allocation7], 0
    %s16 = scalar_lea.sflag [#allocation7], 1
    %17 = vsyncpa %s16, 0
    loop: start=0, step=1, limit=6
    $region2: #{tpu_custom_call.1} parent=1 // loop_pre_header
      _
    $region3: #{tpu_custom_call.1} parent=1 // loop_header
      %s19 = sphi 0, %s23
      %p20 = scmp.ge.s32.totalorder %s19, 6
      %s26 = sphi 0, %s45
      %s27 = sphi 0, %s41
      %s28 = sphi 0, %s37
      %s29 = sphi 0, %s26
      %s30 = sphi 0, %s27
      %s31 = sphi 0, %s28
      %s32 = sphi 0, %s29
      %s33 = sphi 0, %s30
      %s34 = sphi 0, %s31
      %s48 = sphi 0, %s50
      %s51 = sphi 0, %s48
      %s52 = sphi 0, %s51
      %s68 = sphi 0, %s52
      %s72 = sphi 0, %s72
      %s74 = sphi 0, %s72
      %s75 = sphi 0, %s74
      %s89 = sphi 0, %s75
      %s93 = sphi 0, %s93
      %s95 = sphi 0, %s93
      %s96 = sphi 0, %s95
      %s110 = sphi 0, %s96
      %s114 = sphi 0, %s114
      %s116 = sphi 0, %s114
      %s117 = sphi 0, %s116
      %s131 = sphi 0, %s117
      %s135 = sphi 0, %s135
      %s137 = sphi 0, %s135
      %s138 = sphi 0, %s137
      %s152 = sphi 0, %s138
      %s156 = sphi 0, %s156
      %s158 = sphi 0, %s156
      %s159 = sphi 0, %s158
      %s173 = sphi 0, %s159
      %s177 = sphi 0, %s177
      %s179 = sphi 0, %s177
      %s180 = sphi 0, %s179
      %s194 = sphi 0, %s180
      %s204 = sphi 0, %s206
      %s207 = sphi 0, %s204
      %s208 = sphi 0, %s207
      %s224 = sphi 0, %s208
    $region4: #{tpu_custom_call.1} parent=1 // loop_header_branch
      %22 = sbr.rel (%p20) target = $region8
    $region5: #{tpu_custom_call.1} parent=1 // loop_body
      %s24 = ssub.s32 %s19, 1
      %s25 = ssub.s32 %s19, 2
      %s35 = sadd.s32 1, %s28
      %p36 = scmp.ge.s32.totalorder %s35, 1
      %s37 = scalar_select %p36, 0, %s35
      %s38 = sadd.s32 1, %s27
      %s39 = scalar_select %p36, %s38, %s27
      %p40 = scmp.ge.s32.totalorder %s39, 2
      %s41 = scalar_select %p40, 0, %s39
      %s42 = sadd.s32 1, %s26
      %s43 = scalar_select %p40, %s42, %s26
      %p44 = scmp.ge.s32.totalorder %s43, 2
      %s45 = scalar_select %p44, 0, %s43
      %s46 = ssub.s32 %s26, %s45
      %p47 = scmp.eq.s32.totalorder %s46, 0
      %s49 = sadd.s32 %s48, 1
      %s50 = scalar_select %p47, %s48, %s49
      %p53 = pneg %p47
      %p54 = scmp.eq.s32.totalorder %s19, 3
      %p55 = por %p53, %p54
      %p56 = scmp.ne.s32.totalorder %s48, %s51
      %p57 = scmp.eq.s32.totalorder %s19, 0
      %p58 = por %p56, %p57
      %p59 = scmp.ne.s32.totalorder %s48, %s51
      %p60 = scmp.eq.s32.totalorder %s24, 3
      %p61 = por %p59, %p60
      %p62 = scmp.ne.s32.totalorder %s51, %s52
      %p63 = scmp.eq.s32.totalorder %s24, 0
      %p64 = por %p62, %p63
      %p65 = scmp.ne.s32.totalorder %s51, %s52
      %p66 = scmp.eq.s32.totalorder %s25, 3
      %p67 = por %p65, %p66
      %p69 = scmp.ne.s32.totalorder %s52, %s68
      %p70 = scmp.eq.s32.totalorder %s25, 0
      %p71 = por %p69, %p70
      %s73 = sadd.s32 %s72, 1
      %p76 = scmp.eq.s32.totalorder %s19, 3
      %p77 = scmp.ne.s32.totalorder %s72, %s74
      %p78 = scmp.eq.s32.totalorder %s19, 0
      %p79 = por %p77, %p78
      %p80 = scmp.ne.s32.totalorder %s72, %s74
      %p81 = scmp.eq.s32.totalorder %s24, 3
      %p82 = por %p80, %p81
      %p83 = scmp.ne.s32.totalorder %s74, %s75
      %p84 = scmp.eq.s32.totalorder %s24, 0
      %p85 = por %p83, %p84
      %p86 = scmp.ne.s32.totalorder %s74, %s75
      %p87 = scmp.eq.s32.totalorder %s25, 3
      %p88 = por %p86, %p87
      %p90 = scmp.ne.s32.totalorder %s75, %s89
      %p91 = scmp.eq.s32.totalorder %s25, 0
      %p92 = por %p90, %p91
      %s94 = sadd.s32 %s93, 1
      %p97 = scmp.eq.s32.totalorder %s19, 3
      %p98 = scmp.ne.s32.totalorder %s93, %s95
      %p99 = scmp.eq.s32.totalorder %s19, 0
      %p100 = por %p98, %p99
      %p101 = scmp.ne.s32.totalorder %s93, %s95
      %p102 = scmp.eq.s32.totalorder %s24, 3
      %p103 = por %p101, %p102
      %p104 = scmp.ne.s32.totalorder %s95, %s96
      %p105 = scmp.eq.s32.totalorder %s24, 0
      %p106 = por %p104, %p105
      %p107 = scmp.ne.s32.totalorder %s95, %s96
      %p108 = scmp.eq.s32.totalorder %s25, 3
      %p109 = por %p107, %p108
      %p111 = scmp.ne.s32.totalorder %s96, %s110
      %p112 = scmp.eq.s32.totalorder %s25, 0
      %p113 = por %p111, %p112
      %s115 = sadd.s32 %s114, 1
      %p118 = scmp.eq.s32.totalorder %s19, 3
      %p119 = scmp.ne.s32.totalorder %s114, %s116
      %p120 = scmp.eq.s32.totalorder %s19, 0
      %p121 = por %p119, %p120
      %p122 = scmp.ne.s32.totalorder %s114, %s116
      %p123 = scmp.eq.s32.totalorder %s24, 3
      %p124 = por %p122, %p123
      %p125 = scmp.ne.s32.totalorder %s116, %s117
      %p126 = scmp.eq.s32.totalorder %s24, 0
      %p127 = por %p125, %p126
      %p128 = scmp.ne.s32.totalorder %s116, %s117
      %p129 = scmp.eq.s32.totalorder %s25, 3
      %p130 = por %p128, %p129
      %p132 = scmp.ne.s32.totalorder %s117, %s131
      %p133 = scmp.eq.s32.totalorder %s25, 0
      %p134 = por %p132, %p133
      %s136 = sadd.s32 %s135, 1
      %p139 = scmp.eq.s32.totalorder %s19, 3
      %p140 = scmp.ne.s32.totalorder %s135, %s137
      %p141 = scmp.eq.s32.totalorder %s19, 0
      %p142 = por %p140, %p141
      %p143 = scmp.ne.s32.totalorder %s135, %s137
      %p144 = scmp.eq.s32.totalorder %s24, 3
      %p145 = por %p143, %p144
      %p146 = scmp.ne.s32.totalorder %s137, %s138
      %p147 = scmp.eq.s32.totalorder %s24, 0
      %p148 = por %p146, %p147
      %p149 = scmp.ne.s32.totalorder %s137, %s138
      %p150 = scmp.eq.s32.totalorder %s25, 3
      %p151 = por %p149, %p150
      %p153 = scmp.ne.s32.totalorder %s138, %s152
      %p154 = scmp.eq.s32.totalorder %s25, 0
      %p155 = por %p153, %p154
      %s157 = sadd.s32 %s156, 1
      %p160 = scmp.eq.s32.totalorder %s19, 3
      %p161 = scmp.ne.s32.totalorder %s156, %s158
      %p162 = scmp.eq.s32.totalorder %s19, 0
      %p163 = por %p161, %p162
      %p164 = scmp.ne.s32.totalorder %s156, %s158
      %p165 = scmp.eq.s32.totalorder %s24, 3
      %p166 = por %p164, %p165
      %p167 = scmp.ne.s32.totalorder %s158, %s159
      %p168 = scmp.eq.s32.totalorder %s24, 0
      %p169 = por %p167, %p168
      %p170 = scmp.ne.s32.totalorder %s158, %s159
      %p171 = scmp.eq.s32.totalorder %s25, 3
      %p172 = por %p170, %p171
      %p174 = scmp.ne.s32.totalorder %s159, %s173
      %p175 = scmp.eq.s32.totalorder %s25, 0
      %p176 = por %p174, %p175
      %s178 = sadd.s32 %s177, 1
      %p181 = scmp.eq.s32.totalorder %s19, 3
      %p182 = scmp.ne.s32.totalorder %s177, %s179
      %p183 = scmp.eq.s32.totalorder %s19, 0
      %p184 = por %p182, %p183
      %p185 = scmp.ne.s32.totalorder %s177, %s179
      %p186 = scmp.eq.s32.totalorder %s24, 3
      %p187 = por %p185, %p186
      %p188 = scmp.ne.s32.totalorder %s179, %s180
      %p189 = scmp.eq.s32.totalorder %s24, 0
      %p190 = por %p188, %p189
      %p191 = scmp.ne.s32.totalorder %s179, %s180
      %p192 = scmp.eq.s32.totalorder %s25, 3
      %p193 = por %p191, %p192
      %p195 = scmp.ne.s32.totalorder %s180, %s194
      %p196 = scmp.eq.s32.totalorder %s25, 0
      %p197 = por %p195, %p196
      %s198 = smul.u32 %s27, %s28
      %s199 = smul.u32 %s41, %s37
      %s200 = ssub.s32 %s26, %s45
      %s201 = ssub.s32 %s198, %s199
      %s202 = sor.u32 %s200, %s201
      %p203 = scmp.eq.s32.totalorder %s202, 0
      %s205 = sadd.s32 %s204, 1
      %s206 = scalar_select %p203, %s204, %s205
      %p209 = pneg %p203
      %p210 = scmp.eq.s32.totalorder %s19, 3
      %p211 = por %p209, %p210
      %p212 = scmp.ne.s32.totalorder %s204, %s207
      %p213 = scmp.eq.s32.totalorder %s19, 0
      %p214 = por %p212, %p213
      %p215 = scmp.ne.s32.totalorder %s204, %s207
      %p216 = scmp.eq.s32.totalorder %s24, 3
      %p217 = por %p215, %p216
      %p218 = scmp.ne.s32.totalorder %s207, %s208
      %p219 = scmp.eq.s32.totalorder %s24, 0
      %p220 = por %p218, %p219
      %p221 = scmp.ne.s32.totalorder %s207, %s208
      %p222 = scmp.eq.s32.totalorder %s25, 3
      %p223 = por %p221, %p222
      %p225 = scmp.ne.s32.totalorder %s208, %s224
      %p226 = scmp.eq.s32.totalorder %s25, 0
      %p227 = por %p225, %p226
      %p228 = scmp.le.s32.totalorder 1, %s19
      %p229 = scmp.lt.s32.totalorder %s19, 5
      %p230 = pnand %p228, %p229
      %p231 = pneg %p230
      // Predicated region
      $region9: #{tpu_custom_call.1} parent=5 // pred_check
        _
      $region10: #{tpu_custom_call.1} parent=5 // pred_check_branch
        %233 = sbr.rel (%p230) target = $region12
      $region11: #{tpu_custom_call.1} parent=5 // pred_region
        %s234 = ssub.s32 %s19, 1
        // Predicated region
        $region13: #{tpu_custom_call.1} parent=11 // pred_check
          %p235 = pneg %p85
        $region14: #{tpu_custom_call.1} parent=11 // pred_check_branch
          %237 = sbr.rel (%p235) target = $region16
        $region15: #{tpu_custom_call.1} parent=11 // pred_region
          _
        $region16: #{tpu_custom_call.1} parent=11 // pred_fallthru
          _
        // Predicated region
        $region17: #{tpu_custom_call.1} parent=11 // pred_check
          %p238 = pneg %p106
        $region18: #{tpu_custom_call.1} parent=11 // pred_check_branch
          %240 = sbr.rel (%p238) target = $region20
        $region19: #{tpu_custom_call.1} parent=11 // pred_region
          _
        $region20: #{tpu_custom_call.1} parent=11 // pred_fallthru
          _
        // Predicated region
        $region21: #{tpu_custom_call.1} parent=11 // pred_check
          %p241 = pneg %p127
        $region22: #{tpu_custom_call.1} parent=11 // pred_check_branch
          %243 = sbr.rel (%p241) target = $region24
        $region23: #{tpu_custom_call.1} parent=11 // pred_region
          _
        $region24: #{tpu_custom_call.1} parent=11 // pred_fallthru
          _
        // Predicated region
        $region25: #{tpu_custom_call.1} parent=11 // pred_check
          %p244 = pneg %p148
        $region26: #{tpu_custom_call.1} parent=11 // pred_check_branch
          %246 = sbr.rel (%p244) target = $region28
        $region27: #{tpu_custom_call.1} parent=11 // pred_region
          _
        $region28: #{tpu_custom_call.1} parent=11 // pred_fallthru
          _
        // Predicated region
        $region29: #{tpu_custom_call.1} parent=11 // pred_check
          %p247 = pneg %p169
        $region30: #{tpu_custom_call.1} parent=11 // pred_check_branch
          %249 = sbr.rel (%p247) target = $region32
        $region31: #{tpu_custom_call.1} parent=11 // pred_region
          _
        $region32: #{tpu_custom_call.1} parent=11 // pred_fallthru
          _
        // Predicated region
        $region33: #{tpu_custom_call.1} parent=11 // pred_check
          %p250 = pneg %p190
        $region34: #{tpu_custom_call.1} parent=11 // pred_check_branch
          %252 = sbr.rel (%p250) target = $region36
        $region35: #{tpu_custom_call.1} parent=11 // pred_region
          _
        $region36: #{tpu_custom_call.1} parent=11 // pred_fallthru
          _
      $region12: #{tpu_custom_call.1} parent=5 // pred_fallthru
        _
      %p253 = scmp.lt.s32.totalorder %s19, 4
      // Predicated region
      $region37: #{tpu_custom_call.1} parent=5 // pred_check
        %p254 = pneg %p253
      $region38: #{tpu_custom_call.1} parent=5 // pred_check_branch
        %256 = sbr.rel (%p254) target = $region40
      $region39: #{tpu_custom_call.1} parent=5 // pred_region
        // Predicated region
        $region41: #{tpu_custom_call.1} parent=39 // pred_check
          %p257 = pneg %p58
        $region42: #{tpu_custom_call.1} parent=39 // pred_check_branch
          %259 = sbr.rel (%p257) target = $region44
        $region43: #{tpu_custom_call.1} parent=39 // pred_region
          %s260 = sand.u32 %s48, 1
          %s261 = scalar_lea.sflag [#allocation6], %s260
          %s262 = sand.u32 %s48, 1
          %s263 = smul.addr %s262, 128
          %s264 = scalar_lea.vmem [#allocation5], %s263
          %s266 = ssub.s32 2048, 2048
          %267 = vsyncadd %s261, %s266
          %s268 = smul.addr %s26, 32
          %s269 = smul.addr %s268, 64
          %s270 = scalar_lea.hbm %s0, %s269
          %s272 = sshll.u32 %s264, 4
          %s273 = int_to_ptr.vmem [resolvable:$true] %s272
          %275 = dma.hbm_to_vmem [thread:$0]  %s270, 2048, %s273, %s261
        $region44: #{tpu_custom_call.1} parent=39 // pred_fallthru
          _
      $region40: #{tpu_custom_call.1} parent=5 // pred_fallthru
        _
      %p276 = scmp.le.s32.totalorder 1, %s19
      %p277 = scmp.lt.s32.totalorder %s19, 5
      %p278 = pnand %p276, %p277
      %p279 = pneg %p278
      // Predicated region
      $region45: #{tpu_custom_call.1} parent=5 // pred_check
        _
      $region46: #{tpu_custom_call.1} parent=5 // pred_check_branch
        %281 = sbr.rel (%p278) target = $region48
      $region47: #{tpu_custom_call.1} parent=5 // pred_region
        %s282 = ssub.s32 %s19, 1
        %s283 = sand.u32 %s51, 1
        %s284 = scalar_lea.sflag [#allocation6], %s283
        %s285 = sand.u32 %s51, 1
        %s286 = smul.addr %s285, 128
        %s287 = scalar_lea.vmem [#allocation5], %s286
        // Predicated region
        $region49: #{tpu_custom_call.1} parent=47 // pred_check
          %p288 = pneg %p64
        $region50: #{tpu_custom_call.1} parent=47 // pred_check_branch
          %290 = sbr.rel (%p288) target = $region52
        $region51: #{tpu_custom_call.1} parent=47 // pred_region
          %291 = dma.done %s284, 2048
        $region52: #{tpu_custom_call.1} parent=47 // pred_fallthru
          _
        %s292 = sand.u32 %s51, 1
        %s293 = scalar_lea.sflag [#allocation6], %s292
        %s294 = sand.u32 %s51, 1
        %s295 = smul.addr %s294, 128
        %s296 = scalar_lea.vmem [#allocation5], %s295
        %p297 = pneg %p64
        %p298 = pneg %p61
        %p299 = pneg %p85
        %p300 = pneg %p82
        %p301 = pneg %p106
        %p302 = pneg %p103
        %p303 = pneg %p127
        %p304 = pneg %p124
        %p305 = pneg %p148
        %p306 = pneg %p145
        %p307 = pneg %p169
        %p308 = pneg %p166
        %p309 = pneg %p190
        %p310 = pneg %p187
        %p311 = pneg %p220
        %p312 = pneg %p217
        %s313 = sand.u32 %s207, 1
        %s314 = scalar_lea.sflag [#allocation7], %s313
        %s315 = sand.u32 %s207, 1
        %s316 = smul.addr %s315, 256
        %s317 = scalar_lea.vmem [#allocation8], %s316
        %s318 = smul.u32 %s30, %s31
        %s319 = smul.u32 32, %s318
        %s320 = smul.u32 %s31, 4096
        %s321 = sshra.s32 %s320, 7
        %s322 = sand.u32 %s320, 127
        %s323 = smul.addr %s321, 4
        %s324 = scalar_lea.vmem %s287, %s323 [#allocation5]
        %v325 = vld [vmem:[%s324] sm:$0xff]
        %v326 = vld [vmem:[%s324 + $0x8] sm:$0xff]
        %v327 = vld [vmem:[%s324 + $0x10] sm:$0xff]
        %v328 = vld [vmem:[%s324 + $0x18] sm:$0xff]
        %v329 = vld [vmem:[%s324 + $0x20] sm:$0xff]
        %v330 = vld [vmem:[%s324 + $0x28] sm:$0xff]
        %v331 = vld [vmem:[%s324 + $0x30] sm:$0xff]
        %v332 = vld [vmem:[%s324 + $0x38] sm:$0xff]
        %v333 = vld [vmem:[%s324 + $0x40] sm:$0xff]
        %v334 = vld [vmem:[%s324 + $0x48] sm:$0xff]
        %v335 = vld [vmem:[%s324 + $0x50] sm:$0xff]
        %v336 = vld [vmem:[%s324 + $0x58] sm:$0xff]
        %v337 = vld [vmem:[%s324 + $0x60] sm:$0xff]
        %v338 = vld [vmem:[%s324 + $0x68] sm:$0xff]
        %v339 = vld [vmem:[%s324 + $0x70] sm:$0xff]
        %v340 = vld [vmem:[%s324 + $0x78] sm:$0xff]
        %v341 = vld [vmem:[%s1] sm:$0xff]
        %v342 = vld [vmem:[%s2] sm:$0xff]
        %344 = vset.pattern.permute.xlu0 0
        %345 = vperm.xlu0 %344, %v342
        %v346 = vpop.permute.xlu0 %345
        %v364 = vcombine.high %v325, %v325
        %v365 = vcombine.high %v326, %v326
        %v366 = vcombine.high %v327, %v327
        %v367 = vcombine.high %v328, %v328
        %v368 = vcombine.high %v329, %v329
        %v369 = vcombine.high %v330, %v330
        %v370 = vcombine.high %v331, %v331
        %v371 = vcombine.high %v332, %v332
        %v372 = vcombine.high %v333, %v333
        %v373 = vcombine.high %v334, %v334
        %v374 = vcombine.high %v335, %v335
        %v375 = vcombine.high %v336, %v336
        %v376 = vcombine.high %v337, %v337
        %v377 = vcombine.high %v338, %v338
        %v378 = vcombine.high %v339, %v339
        %v379 = vcombine.high %v340, %v340
        %vm380 = vcmask 31744
        %v382 = vsel %vm380, %v341, 0
        %vm384 = vcmask 1043456
        %v385 = vsel %vm384, %v325, 0
        %v387 = vsel %vm384, %v364, 0
        %v389 = vsel %vm384, %v326, 0
        %v391 = vsel %vm384, %v365, 0
        %v393 = vsel %vm384, %v327, 0
        %v395 = vsel %vm384, %v366, 0
        %v397 = vsel %vm384, %v328, 0
        %v399 = vsel %vm384, %v367, 0
        %v401 = vsel %vm384, %v329, 0
        %v403 = vsel %vm384, %v368, 0
        %v405 = vsel %vm384, %v330, 0
        %v407 = vsel %vm384, %v369, 0
        %v409 = vsel %vm384, %v331, 0
        %v411 = vsel %vm384, %v370, 0
        %v413 = vsel %vm384, %v332, 0
        %v415 = vsel %vm384, %v371, 0
        %v417 = vsel %vm384, %v333, 0
        %v419 = vsel %vm384, %v372, 0
        %v421 = vsel %vm384, %v334, 0
        %v423 = vsel %vm384, %v373, 0
        %v425 = vsel %vm384, %v335, 0
        %v427 = vsel %vm384, %v374, 0
        %v429 = vsel %vm384, %v336, 0
        %v431 = vsel %vm384, %v375, 0
        %v433 = vsel %vm384, %v337, 0
        %v435 = vsel %vm384, %v376, 0
        %v437 = vsel %vm384, %v338, 0
        %v439 = vsel %vm384, %v377, 0
        %v441 = vsel %vm384, %v339, 0
        %v443 = vsel %vm384, %v378, 0
        %v445 = vsel %vm384, %v340, 0
        %v447 = vsel %vm384, %v379, 0
        %449 = vmatprep.subr.mxu0 %v387
        %450 = vmatpush1.msra.mxu0 %v385
        %451 = vmatprep.subr.mxu0 0.0
        %452 = vmatpush1.msra.mxu0 0.0
        %453 = vmatprep.subr.mxu0 0.0
        %454 = vmatpush1.msra.mxu0 0.0
        %455 = vmatprep.subr.mxu0 0.0
        %456 = vmatpush1.msra.mxu0 0.0
        %457 = vmatprep.subr.mxu0 0.0
        %458 = vmatpush1.msra.mxu0 0.0
        %459 = vmatprep.subr.mxu0 0.0
        %460 = vmatpush1.msra.mxu0 0.0
        %461 = vmatprep.subr.mxu0 0.0
        %462 = vmatpush1.msra.mxu0 0.0
        %463 = vmatprep.subr.mxu0 0.0
        %464 = vmatpush1.msra.mxu0 0.0
        %465 = vmatprep.subr.mxu0 0.0
        %466 = vmatpush1.msra.mxu0 0.0
        %467 = vmatprep.subr.mxu0 0.0
        %468 = vmatpush1.msra.mxu0 0.0
        %469 = vmatprep.subr.mxu0 0.0
        %470 = vmatpush1.msra.mxu0 0.0
        %471 = vmatprep.subr.mxu0 0.0
        %472 = vmatpush1.msra.mxu0 0.0
        %473 = vmatprep.subr.mxu0 0.0
        %474 = vmatpush1.msra.mxu0 0.0
        %475 = vmatprep.subr.mxu0 0.0
        %476 = vmatpush1.msra.mxu0 0.0
        %477 = vmatprep.subr.mxu0 0.0
        %478 = vmatpush1.msra.mxu0 0.0
        %479 = vmatprep.subr.mxu0 0.0
        %480 = vmatpush1.msra.mxu0 0.0
        %481 = vmatprep.subr.mxu0 0.0
        %482 = vmatpush1.msra.mxu0 0.0
        %483 = vmatprep.subr.mxu0 0.0
        %484 = vmatpush1.msra.mxu0 0.0
        %485 = vmatprep.subr.mxu0 0.0
        %486 = vmatpush1.msra.mxu0 0.0
        %487 = vmatprep.subr.mxu0 0.0
        %488 = vmatpush1.msra.mxu0 0.0
        %489 = vmatprep.subr.mxu0 0.0
        %490 = vmatpush1.msra.mxu0 0.0
        %491 = vmatprep.subr.mxu0 0.0
        %492 = vmatpush1.msra.mxu0 0.0
        %493 = vmatprep.subr.mxu0 0.0
        %494 = vmatpush1.msra.mxu0 0.0
        %495 = vmatprep.subr.mxu0 0.0
        %496 = vmatpush1.msra.mxu0 0.0
        %497 = vmatprep.subr.mxu0 0.0
        %498 = vmatpush1.msra.mxu0 0.0
        %499 = vmatprep.subr.mxu0 0.0
        %500 = vmatpush1.msra.mxu0 0.0
        %501 = vmatprep.subr.mxu0 0.0
        %502 = vmatpush1.msra.mxu0 0.0
        %503 = vmatprep.subr.mxu0 0.0
        %504 = vmatpush1.msra.mxu0 0.0
        %505 = vmatprep.subr.mxu0 0.0
        %506 = vmatpush1.msra.mxu0 0.0
        %507 = vmatprep.subr.mxu0 0.0
        %508 = vmatpush1.msra.mxu0 0.0
        %509 = vmatprep.subr.mxu0 0.0
        %510 = vmatpush1.msra.mxu0 0.0
        %511 = vmatprep.subr.mxu0 0.0
        %512 = vmatpush1.msra.mxu0 0.0
        %513 = vmatprep.mubr.f32.mxu0 0.0
        %514 = vmatmul.mubr.f32.gmra.mrb[0].mxu0 %v382
        %v515 = vpop.f32.mrb[0].mxu0
        %v516 = vadd.f32 %v346, %v515
        %v517 = vpop.f32.mrb[0].mxu0
        %v518 = vadd.f32 %v346, %v517
        %519 = vdwg.mxu0
        %520 = vmatprep.subr.mxu0 %v391
        %521 = vmatpush1.msra.mxu0 %v389
        %522 = vmatprep.subr.mxu0 0.0
        %523 = vmatpush1.msra.mxu0 0.0
        %524 = vmatprep.subr.mxu0 0.0
        %525 = vmatpush1.msra.mxu0 0.0
        %526 = vmatprep.subr.mxu0 0.0
        %527 = vmatpush1.msra.mxu0 0.0
        %528 = vmatprep.subr.mxu0 0.0
        %529 = vmatpush1.msra.mxu0 0.0
        %530 = vmatprep.subr.mxu0 0.0
        %531 = vmatpush1.msra.mxu0 0.0
        %532 = vmatprep.subr.mxu0 0.0
        %533 = vmatpush1.msra.mxu0 0.0
        %534 = vmatprep.subr.mxu0 0.0
        %535 = vmatpush1.msra.mxu0 0.0
        %536 = vmatprep.subr.mxu0 0.0
        %537 = vmatpush1.msra.mxu0 0.0
        %538 = vmatprep.subr.mxu0 0.0
        %539 = vmatpush1.msra.mxu0 0.0
        %540 = vmatprep.subr.mxu0 0.0
        %541 = vmatpush1.msra.mxu0 0.0
        %542 = vmatprep.subr.mxu0 0.0
        %543 = vmatpush1.msra.mxu0 0.0
        %544 = vmatprep.subr.mxu0 0.0
        %545 = vmatpush1.msra.mxu0 0.0
        %546 = vmatprep.subr.mxu0 0.0
        %547 = vmatpush1.msra.mxu0 0.0
        %548 = vmatprep.subr.mxu0 0.0
        %549 = vmatpush1.msra.mxu0 0.0
        %550 = vmatprep.subr.mxu0 0.0
        %551 = vmatpush1.msra.mxu0 0.0
        %552 = vmatprep.subr.mxu0 0.0
        %553 = vmatpush1.msra.mxu0 0.0
        %554 = vmatprep.subr.mxu0 0.0
        %555 = vmatpush1.msra.mxu0 0.0
        %556 = vmatprep.subr.mxu0 0.0
        %557 = vmatpush1.msra.mxu0 0.0
        %558 = vmatprep.subr.mxu0 0.0
        %559 = vmatpush1.msra.mxu0 0.0
        %560 = vmatprep.subr.mxu0 0.0
        %561 = vmatpush1.msra.mxu0 0.0
        %562 = vmatprep.subr.mxu0 0.0
        %563 = vmatpush1.msra.mxu0 0.0
        %564 = vmatprep.subr.mxu0 0.0
        %565 = vmatpush1.msra.mxu0 0.0
        %566 = vmatprep.subr.mxu0 0.0
        %567 = vmatpush1.msra.mxu0 0.0
        %568 = vmatprep.subr.mxu0 0.0
        %569 = vmatpush1.msra.mxu0 0.0
        %570 = vmatprep.subr.mxu0 0.0
        %571 = vmatpush1.msra.mxu0 0.0
        %572 = vmatprep.subr.mxu0 0.0
        %573 = vmatpush1.msra.mxu0 0.0
        %574 = vmatprep.subr.mxu0 0.0
        %575 = vmatpush1.msra.mxu0 0.0
        %576 = vmatprep.subr.mxu0 0.0
        %577 = vmatpush1.msra.mxu0 0.0
        %578 = vmatprep.subr.mxu0 0.0
        %579 = vmatpush1.msra.mxu0 0.0
        %580 = vmatprep.subr.mxu0 0.0
        %581 = vmatpush1.msra.mxu0 0.0
        %582 = vmatprep.subr.mxu0 0.0
        %583 = vmatpush1.msra.mxu0 0.0
        %584 = vmatprep.mubr.f32.mxu0 0.0
        %585 = vmatmul.mubr.f32.gmra.mrb[0].mxu0 %v382
        %v586 = vpop.f32.mrb[0].mxu0
        %v587 = vadd.f32 %v346, %v586
        %v588 = vpop.f32.mrb[0].mxu0
        %v589 = vadd.f32 %v346, %v588
        %590 = vdwg.mxu0
        %591 = vmatprep.subr.mxu0 %v395
        %592 = vmatpush1.msra.mxu0 %v393
        %593 = vmatprep.subr.mxu0 0.0
        %594 = vmatpush1.msra.mxu0 0.0
        %595 = vmatprep.subr.mxu0 0.0
        %596 = vmatpush1.msra.mxu0 0.0
        %597 = vmatprep.subr.mxu0 0.0
        %598 = vmatpush1.msra.mxu0 0.0
        %599 = vmatprep.subr.mxu0 0.0
        %600 = vmatpush1.msra.mxu0 0.0
        %601 = vmatprep.subr.mxu0 0.0
        %602 = vmatpush1.msra.mxu0 0.0
        %603 = vmatprep.subr.mxu0 0.0
        %604 = vmatpush1.msra.mxu0 0.0
        %605 = vmatprep.subr.mxu0 0.0
        %606 = vmatpush1.msra.mxu0 0.0
        %607 = vmatprep.subr.mxu0 0.0
        %608 = vmatpush1.msra.mxu0 0.0
        %609 = vmatprep.subr.mxu0 0.0
        %610 = vmatpush1.msra.mxu0 0.0
        %611 = vmatprep.subr.mxu0 0.0
        %612 = vmatpush1.msra.mxu0 0.0
        %613 = vmatprep.subr.mxu0 0.0
        %614 = vmatpush1.msra.mxu0 0.0
        %615 = vmatprep.subr.mxu0 0.0
        %616 = vmatpush1.msra.mxu0 0.0
        %617 = vmatprep.subr.mxu0 0.0
        %618 = vmatpush1.msra.mxu0 0.0
        %619 = vmatprep.subr.mxu0 0.0
        %620 = vmatpush1.msra.mxu0 0.0
        %621 = vmatprep.subr.mxu0 0.0
        %622 = vmatpush1.msra.mxu0 0.0
        %623 = vmatprep.subr.mxu0 0.0
        %624 = vmatpush1.msra.mxu0 0.0
        %625 = vmatprep.subr.mxu0 0.0
        %626 = vmatpush1.msra.mxu0 0.0
        %627 = vmatprep.subr.mxu0 0.0
        %628 = vmatpush1.msra.mxu0 0.0
        %629 = vmatprep.subr.mxu0 0.0
        %630 = vmatpush1.msra.mxu0 0.0
        %631 = vmatprep.subr.mxu0 0.0
        %632 = vmatpush1.msra.mxu0 0.0
        %633 = vmatprep.subr.mxu0 0.0
        %634 = vmatpush1.msra.mxu0 0.0
        %635 = vmatprep.subr.mxu0 0.0
        %636 = vmatpush1.msra.mxu0 0.0
        %637 = vmatprep.subr.mxu0 0.0
        %638 = vmatpush1.msra.mxu0 0.0
        %639 = vmatprep.subr.mxu0 0.0
        %640 = vmatpush1.msra.mxu0 0.0
        %641 = vmatprep.subr.mxu0 0.0
        %642 = vmatpush1.msra.mxu0 0.0
        %643 = vmatprep.subr.mxu0 0.0
        %644 = vmatpush1.msra.mxu0 0.0
        %645 = vmatprep.subr.mxu0 0.0
        %646 = vmatpush1.msra.mxu0 0.0
        %647 = vmatprep.subr.mxu0 0.0
        %648 = vmatpush1.msra.mxu0 0.0
        %649 = vmatprep.subr.mxu0 0.0
        %650 = vmatpush1.msra.mxu0 0.0
        %651 = vmatprep.subr.mxu0 0.0
        %652 = vmatpush1.msra.mxu0 0.0
        %653 = vmatprep.subr.mxu0 0.0
        %654 = vmatpush1.msra.mxu0 0.0
        %655 = vmatprep.mubr.f32.mxu0 0.0
        %656 = vmatmul.mubr.f32.gmra.mrb[0].mxu0 %v382
        %v657 = vpop.f32.mrb[0].mxu0
        %v658 = vadd.f32 %v346, %v657
        %v659 = vpop.f32.mrb[0].mxu0
        %v660 = vadd.f32 %v346, %v659
        %661 = vdwg.mxu0
        %662 = vmatprep.subr.mxu0 %v399
        %663 = vmatpush1.msra.mxu0 %v397
        %664 = vmatprep.subr.mxu0 0.0
        %665 = vmatpush1.msra.mxu0 0.0
        %666 = vmatprep.subr.mxu0 0.0
        %667 = vmatpush1.msra.mxu0 0.0
        %668 = vmatprep.subr.mxu0 0.0
        %669 = vmatpush1.msra.mxu0 0.0
        %670 = vmatprep.subr.mxu0 0.0
        %671 = vmatpush1.msra.mxu0 0.0
        %672 = vmatprep.subr.mxu0 0.0
        %673 = vmatpush1.msra.mxu0 0.0
        %674 = vmatprep.subr.mxu0 0.0
        %675 = vmatpush1.msra.mxu0 0.0
        %676 = vmatprep.subr.mxu0 0.0
        %677 = vmatpush1.msra.mxu0 0.0
        %678 = vmatprep.subr.mxu0 0.0
        %679 = vmatpush1.msra.mxu0 0.0
        %680 = vmatprep.subr.mxu0 0.0
        %681 = vmatpush1.msra.mxu0 0.0
        %682 = vmatprep.subr.mxu0 0.0
        %683 = vmatpush1.msra.mxu0 0.0
        %684 = vmatprep.subr.mxu0 0.0
        %685 = vmatpush1.msra.mxu0 0.0
        %686 = vmatprep.subr.mxu0 0.0
        %687 = vmatpush1.msra.mxu0 0.0
        %688 = vmatprep.subr.mxu0 0.0
        %689 = vmatpush1.msra.mxu0 0.0
        %690 = vmatprep.subr.mxu0 0.0
        %691 = vmatpush1.msra.mxu0 0.0
        %692 = vmatprep.subr.mxu0 0.0
        %693 = vmatpush1.msra.mxu0 0.0
        %694 = vmatprep.subr.mxu0 0.0
        %695 = vmatpush1.msra.mxu0 0.0
        %696 = vmatprep.subr.mxu0 0.0
        %697 = vmatpush1.msra.mxu0 0.0
        %698 = vmatprep.subr.mxu0 0.0
        %699 = vmatpush1.msra.mxu0 0.0
        %700 = vmatprep.subr.mxu0 0.0
        %701 = vmatpush1.msra.mxu0 0.0
        %702 = vmatprep.subr.mxu0 0.0
        %703 = vmatpush1.msra.mxu0 0.0
        %704 = vmatprep.subr.mxu0 0.0
        %705 = vmatpush1.msra.mxu0 0.0
        %706 = vmatprep.subr.mxu0 0.0
        %707 = vmatpush1.msra.mxu0 0.0
        %708 = vmatprep.subr.mxu0 0.0
        %709 = vmatpush1.msra.mxu0 0.0
        %710 = vmatprep.subr.mxu0 0.0
        %711 = vmatpush1.msra.mxu0 0.0
        %712 = vmatprep.subr.mxu0 0.0
        %713 = vmatpush1.msra.mxu0 0.0
        %714 = vmatprep.subr.mxu0 0.0
        %715 = vmatpush1.msra.mxu0 0.0
        %716 = vmatprep.subr.mxu0 0.0
        %717 = vmatpush1.msra.mxu0 0.0
        %718 = vmatprep.subr.mxu0 0.0
        %719 = vmatpush1.msra.mxu0 0.0
        %720 = vmatprep.subr.mxu0 0.0
        %721 = vmatpush1.msra.mxu0 0.0
        %722 = vmatprep.subr.mxu0 0.0
        %723 = vmatpush1.msra.mxu0 0.0
        %724 = vmatprep.subr.mxu0 0.0
        %725 = vmatpush1.msra.mxu0 0.0
        %726 = vmatprep.mubr.f32.mxu0 0.0
        %727 = vmatmul.mubr.f32.gmra.mrb[0].mxu0 %v382
        %v728 = vpop.f32.mrb[0].mxu0
        %v729 = vadd.f32 %v346, %v728
        %v730 = vpop.f32.mrb[0].mxu0
        %v731 = vadd.f32 %v346, %v730
        %732 = vdwg.mxu0
        %733 = vmatprep.subr.mxu0 %v403
        %734 = vmatpush1.msra.mxu0 %v401
        %735 = vmatprep.subr.mxu0 0.0
        %736 = vmatpush1.msra.mxu0 0.0
        %737 = vmatprep.subr.mxu0 0.0
        %738 = vmatpush1.msra.mxu0 0.0
        %739 = vmatprep.subr.mxu0 0.0
        %740 = vmatpush1.msra.mxu0 0.0
        %741 = vmatprep.subr.mxu0 0.0
        %742 = vmatpush1.msra.mxu0 0.0
        %743 = vmatprep.subr.mxu0 0.0
        %744 = vmatpush1.msra.mxu0 0.0
        %745 = vmatprep.subr.mxu0 0.0
        %746 = vmatpush1.msra.mxu0 0.0
        %747 = vmatprep.subr.mxu0 0.0
        %748 = vmatpush1.msra.mxu0 0.0
        %749 = vmatprep.subr.mxu0 0.0
        %750 = vmatpush1.msra.mxu0 0.0
        %751 = vmatprep.subr.mxu0 0.0
        %752 = vmatpush1.msra.mxu0 0.0
        %753 = vmatprep.subr.mxu0 0.0
        %754 = vmatpush1.msra.mxu0 0.0
        %755 = vmatprep.subr.mxu0 0.0
        %756 = vmatpush1.msra.mxu0 0.0
        %757 = vmatprep.subr.mxu0 0.0
        %758 = vmatpush1.msra.mxu0 0.0
        %759 = vmatprep.subr.mxu0 0.0
        %760 = vmatpush1.msra.mxu0 0.0
        %761 = vmatprep.subr.mxu0 0.0
        %762 = vmatpush1.msra.mxu0 0.0
        %763 = vmatprep.subr.mxu0 0.0
        %764 = vmatpush1.msra.mxu0 0.0
        %765 = vmatprep.subr.mxu0 0.0
        %766 = vmatpush1.msra.mxu0 0.0
        %767 = vmatprep.subr.mxu0 0.0
        %768 = vmatpush1.msra.mxu0 0.0
        %769 = vmatprep.subr.mxu0 0.0
        %770 = vmatpush1.msra.mxu0 0.0
        %771 = vmatprep.subr.mxu0 0.0
        %772 = vmatpush1.msra.mxu0 0.0
        %773 = vmatprep.subr.mxu0 0.0
        %774 = vmatpush1.msra.mxu0 0.0
        %775 = vmatprep.subr.mxu0 0.0
        %776 = vmatpush1.msra.mxu0 0.0
        %777 = vmatprep.subr.mxu0 0.0
        %778 = vmatpush1.msra.mxu0 0.0
        %779 = vmatprep.subr.mxu0 0.0
        %780 = vmatpush1.msra.mxu0 0.0
        %781 = vmatprep.subr.mxu0 0.0
        %782 = vmatpush1.msra.mxu0 0.0
        %783 = vmatprep.subr.mxu0 0.0
        %784 = vmatpush1.msra.mxu0 0.0
        %785 = vmatprep.subr.mxu0 0.0
        %786 = vmatpush1.msra.mxu0 0.0
        %787 = vmatprep.subr.mxu0 0.0
        %788 = vmatpush1.msra.mxu0 0.0
        %789 = vmatprep.subr.mxu0 0.0
        %790 = vmatpush1.msra.mxu0 0.0
        %791 = vmatprep.subr.mxu0 0.0
        %792 = vmatpush1.msra.mxu0 0.0
        %793 = vmatprep.subr.mxu0 0.0
        %794 = vmatpush1.msra.mxu0 0.0
        %795 = vmatprep.subr.mxu0 0.0
        %796 = vmatpush1.msra.mxu0 0.0
        %797 = vmatprep.mubr.f32.mxu0 0.0
        %798 = vmatmul.mubr.f32.gmra.mrb[0].mxu0 %v382
        %v799 = vpop.f32.mrb[0].mxu0
        %v800 = vadd.f32 %v346, %v799
        %v801 = vpop.f32.mrb[0].mxu0
        %v802 = vadd.f32 %v346, %v801
        %803 = vdwg.mxu0
        %804 = vmatprep.subr.mxu0 %v407
        %805 = vmatpush1.msra.mxu0 %v405
        %806 = vmatprep.subr.mxu0 0.0
        %807 = vmatpush1.msra.mxu0 0.0
        %808 = vmatprep.subr.mxu0 0.0
        %809 = vmatpush1.msra.mxu0 0.0
        %810 = vmatprep.subr.mxu0 0.0
        %811 = vmatpush1.msra.mxu0 0.0
        %812 = vmatprep.subr.mxu0 0.0
        %813 = vmatpush1.msra.mxu0 0.0
        %814 = vmatprep.subr.mxu0 0.0
        %815 = vmatpush1.msra.mxu0 0.0
        %816 = vmatprep.subr.mxu0 0.0
        %817 = vmatpush1.msra.mxu0 0.0
        %818 = vmatprep.subr.mxu0 0.0
        %819 = vmatpush1.msra.mxu0 0.0
        %820 = vmatprep.subr.mxu0 0.0
        %821 = vmatpush1.msra.mxu0 0.0
        %822 = vmatprep.subr.mxu0 0.0
        %823 = vmatpush1.msra.mxu0 0.0
        %824 = vmatprep.subr.mxu0 0.0
        %825 = vmatpush1.msra.mxu0 0.0
        %826 = vmatprep.subr.mxu0 0.0
        %827 = vmatpush1.msra.mxu0 0.0
        %828 = vmatprep.subr.mxu0 0.0
        %829 = vmatpush1.msra.mxu0 0.0
        %830 = vmatprep.subr.mxu0 0.0
        %831 = vmatpush1.msra.mxu0 0.0
        %832 = vmatprep.subr.mxu0 0.0
        %833 = vmatpush1.msra.mxu0 0.0
        %834 = vmatprep.subr.mxu0 0.0
        %835 = vmatpush1.msra.mxu0 0.0
        %836 = vmatprep.subr.mxu0 0.0
        %837 = vmatpush1.msra.mxu0 0.0
        %838 = vmatprep.subr.mxu0 0.0
        %839 = vmatpush1.msra.mxu0 0.0
        %840 = vmatprep.subr.mxu0 0.0
        %841 = vmatpush1.msra.mxu0 0.0
        %842 = vmatprep.subr.mxu0 0.0
        %843 = vmatpush1.msra.mxu0 0.0
        %844 = vmatprep.subr.mxu0 0.0
        %845 = vmatpush1.msra.mxu0 0.0
        %846 = vmatprep.subr.mxu0 0.0
        %847 = vmatpush1.msra.mxu0 0.0
        %848 = vmatprep.subr.mxu0 0.0
        %849 = vmatpush1.msra.mxu0 0.0
        %850 = vmatprep.subr.mxu0 0.0
        %851 = vmatpush1.msra.mxu0 0.0
        %852 = vmatprep.subr.mxu0 0.0
        %853 = vmatpush1.msra.mxu0 0.0
        %854 = vmatprep.subr.mxu0 0.0
        %855 = vmatpush1.msra.mxu0 0.0
        %856 = vmatprep.subr.mxu0 0.0
        %857 = vmatpush1.msra.mxu0 0.0
        %858 = vmatprep.subr.mxu0 0.0
        %859 = vmatpush1.msra.mxu0 0.0
        %860 = vmatprep.subr.mxu0 0.0
        %861 = vmatpush1.msra.mxu0 0.0
        %862 = vmatprep.subr.mxu0 0.0
        %863 = vmatpush1.msra.mxu0 0.0
        %864 = vmatprep.subr.mxu0 0.0
        %865 = vmatpush1.msra.mxu0 0.0
        %866 = vmatprep.subr.mxu0 0.0
        %867 = vmatpush1.msra.mxu0 0.0
        %868 = vmatprep.mubr.f32.mxu0 0.0
        %869 = vmatmul.mubr.f32.gmra.mrb[0].mxu0 %v382
        %v870 = vpop.f32.mrb[0].mxu0
        %v871 = vadd.f32 %v346, %v870
        %v872 = vpop.f32.mrb[0].mxu0
        %v873 = vadd.f32 %v346, %v872
        %874 = vdwg.mxu0
        %875 = vmatprep.subr.mxu0 %v411
        %876 = vmatpush1.msra.mxu0 %v409
        %877 = vmatprep.subr.mxu0 0.0
        %878 = vmatpush1.msra.mxu0 0.0
        %879 = vmatprep.subr.mxu0 0.0
        %880 = vmatpush1.msra.mxu0 0.0
        %881 = vmatprep.subr.mxu0 0.0
        %882 = vmatpush1.msra.mxu0 0.0
        %883 = vmatprep.subr.mxu0 0.0
        %884 = vmatpush1.msra.mxu0 0.0
        %885 = vmatprep.subr.mxu0 0.0
        %886 = vmatpush1.msra.mxu0 0.0
        %887 = vmatprep.subr.mxu0 0.0
        %888 = vmatpush1.msra.mxu0 0.0
        %889 = vmatprep.subr.mxu0 0.0
        %890 = vmatpush1.msra.mxu0 0.0
        %891 = vmatprep.subr.mxu0 0.0
        %892 = vmatpush1.msra.mxu0 0.0
        %893 = vmatprep.subr.mxu0 0.0
        %894 = vmatpush1.msra.mxu0 0.0
        %895 = vmatprep.subr.mxu0 0.0
        %896 = vmatpush1.msra.mxu0 0.0
        %897 = vmatprep.subr.mxu0 0.0
        %898 = vmatpush1.msra.mxu0 0.0
        %899 = vmatprep.subr.mxu0 0.0
        %900 = vmatpush1.msra.mxu0 0.0
        %901 = vmatprep.subr.mxu0 0.0
        %902 = vmatpush1.msra.mxu0 0.0
        %903 = vmatprep.subr.mxu0 0.0
        %904 = vmatpush1.msra.mxu0 0.0
        %905 = vmatprep.subr.mxu0 0.0
        %906 = vmatpush1.msra.mxu0 0.0
        %907 = vmatprep.subr.mxu0 0.0
        %908 = vmatpush1.msra.mxu0 0.0
        %909 = vmatprep.subr.mxu0 0.0
        %910 = vmatpush1.msra.mxu0 0.0
        %911 = vmatprep.subr.mxu0 0.0
        %912 = vmatpush1.msra.mxu0 0.0
        %913 = vmatprep.subr.mxu0 0.0
        %914 = vmatpush1.msra.mxu0 0.0
        %915 = vmatprep.subr.mxu0 0.0
        %916 = vmatpush1.msra.mxu0 0.0
        %917 = vmatprep.subr.mxu0 0.0
        %918 = vmatpush1.msra.mxu0 0.0
        %919 = vmatprep.subr.mxu0 0.0
        %920 = vmatpush1.msra.mxu0 0.0
        %921 = vmatprep.subr.mxu0 0.0
        %922 = vmatpush1.msra.mxu0 0.0
        %923 = vmatprep.subr.mxu0 0.0
        %924 = vmatpush1.msra.mxu0 0.0
        %925 = vmatprep.subr.mxu0 0.0
        %926 = vmatpush1.msra.mxu0 0.0
        %927 = vmatprep.subr.mxu0 0.0
        %928 = vmatpush1.msra.mxu0 0.0
        %929 = vmatprep.subr.mxu0 0.0
        %930 = vmatpush1.msra.mxu0 0.0
        %931 = vmatprep.subr.mxu0 0.0
        %932 = vmatpush1.msra.mxu0 0.0
        %933 = vmatprep.subr.mxu0 0.0
        %934 = vmatpush1.msra.mxu0 0.0
        %935 = vmatprep.subr.mxu0 0.0
        %936 = vmatpush1.msra.mxu0 0.0
        %937 = vmatprep.subr.mxu0 0.0
        %938 = vmatpush1.msra.mxu0 0.0
        %939 = vmatprep.mubr.f32.mxu0 0.0
        %940 = vmatmul.mubr.f32.gmra.mrb[0].mxu0 %v382
        %v941 = vpop.f32.mrb[0].mxu0
        %v942 = vadd.f32 %v346, %v941
        %v943 = vpop.f32.mrb[0].mxu0
        %v944 = vadd.f32 %v346, %v943
        %945 = vdwg.mxu0
        %946 = vmatprep.subr.mxu0 %v415
        %947 = vmatpush1.msra.mxu0 %v413
        %948 = vmatprep.subr.mxu0 0.0
        %949 = vmatpush1.msra.mxu0 0.0
        %950 = vmatprep.subr.mxu0 0.0
        %951 = vmatpush1.msra.mxu0 0.0
        %952 = vmatprep.subr.mxu0 0.0
        %953 = vmatpush1.msra.mxu0 0.0
        %954 = vmatprep.subr.mxu0 0.0
        %955 = vmatpush1.msra.mxu0 0.0
        %956 = vmatprep.subr.mxu0 0.0
        %957 = vmatpush1.msra.mxu0 0.0
        %958 = vmatprep.subr.mxu0 0.0
        %959 = vmatpush1.msra.mxu0 0.0
        %960 = vmatprep.subr.mxu0 0.0
        %961 = vmatpush1.msra.mxu0 0.0
        %962 = vmatprep.subr.mxu0 0.0
        %963 = vmatpush1.msra.mxu0 0.0
        %964 = vmatprep.subr.mxu0 0.0
        %965 = vmatpush1.msra.mxu0 0.0
        %966 = vmatprep.subr.mxu0 0.0
        %967 = vmatpush1.msra.mxu0 0.0
        %968 = vmatprep.subr.mxu0 0.0
        %969 = vmatpush1.msra.mxu0 0.0
        %970 = vmatprep.subr.mxu0 0.0
        %971 = vmatpush1.msra.mxu0 0.0
        %972 = vmatprep.subr.mxu0 0.0
        %973 = vmatpush1.msra.mxu0 0.0
        %974 = vmatprep.subr.mxu0 0.0
        %975 = vmatpush1.msra.mxu0 0.0
        %976 = vmatprep.subr.mxu0 0.0
        %977 = vmatpush1.msra.mxu0 0.0
        %978 = vmatprep.subr.mxu0 0.0
        %979 = vmatpush1.msra.mxu0 0.0
        %980 = vmatprep.subr.mxu0 0.0
        %981 = vmatpush1.msra.mxu0 0.0
        %982 = vmatprep.subr.mxu0 0.0
        %983 = vmatpush1.msra.mxu0 0.0
        %984 = vmatprep.subr.mxu0 0.0
        %985 = vmatpush1.msra.mxu0 0.0
        %986 = vmatprep.subr.mxu0 0.0
        %987 = vmatpush1.msra.mxu0 0.0
        %988 = vmatprep.subr.mxu0 0.0
        %989 = vmatpush1.msra.mxu0 0.0
        %990 = vmatprep.subr.mxu0 0.0
        %991 = vmatpush1.msra.mxu0 0.0
        %992 = vmatprep.subr.mxu0 0.0
        %993 = vmatpush1.msra.mxu0 0.0
        %994 = vmatprep.subr.mxu0 0.0
        %995 = vmatpush1.msra.mxu0 0.0
        %996 = vmatprep.subr.mxu0 0.0
        %997 = vmatpush1.msra.mxu0 0.0
        %998 = vmatprep.subr.mxu0 0.0
        %999 = vmatpush1.msra.mxu0 0.0
        %1000 = vmatprep.subr.mxu0 0.0
        %1001 = vmatpush1.msra.mxu0 0.0
        %1002 = vmatprep.subr.mxu0 0.0
        %1003 = vmatpush1.msra.mxu0 0.0
        %1004 = vmatprep.subr.mxu0 0.0
        %1005 = vmatpush1.msra.mxu0 0.0
        %1006 = vmatprep.subr.mxu0 0.0
        %1007 = vmatpush1.msra.mxu0 0.0
        %1008 = vmatprep.subr.mxu0 0.0
        %1009 = vmatpush1.msra.mxu0 0.0
        %1010 = vmatprep.mubr.f32.mxu0 0.0
        %1011 = vmatmul.mubr.f32.gmra.mrb[0].mxu0 %v382
        %v1012 = vpop.f32.mrb[0].mxu0
        %v1013 = vadd.f32 %v346, %v1012
        %v1014 = vpop.f32.mrb[0].mxu0
        %v1015 = vadd.f32 %v346, %v1014
        %1016 = vdwg.mxu0
        %1017 = vmatprep.subr.mxu0 %v419
        %1018 = vmatpush1.msra.mxu0 %v417
        %1019 = vmatprep.subr.mxu0 0.0
        %1020 = vmatpush1.msra.mxu0 0.0
        %1021 = vmatprep.subr.mxu0 0.0
        %1022 = vmatpush1.msra.mxu0 0.0
        %1023 = vmatprep.subr.mxu0 0.0
        %1024 = vmatpush1.msra.mxu0 0.0
        %1025 = vmatprep.subr.mxu0 0.0
        %1026 = vmatpush1.msra.mxu0 0.0
        %1027 = vmatprep.subr.mxu0 0.0
        %1028 = vmatpush1.msra.mxu0 0.0
        %1029 = vmatprep.subr.mxu0 0.0
        %1030 = vmatpush1.msra.mxu0 0.0
        %1031 = vmatprep.subr.mxu0 0.0
        %1032 = vmatpush1.msra.mxu0 0.0
        %1033 = vmatprep.subr.mxu0 0.0
        %1034 = vmatpush1.msra.mxu0 0.0
        %1035 = vmatprep.subr.mxu0 0.0
        %1036 = vmatpush1.msra.mxu0 0.0
        %1037 = vmatprep.subr.mxu0 0.0
        %1038 = vmatpush1.msra.mxu0 0.0
        %1039 = vmatprep.subr.mxu0 0.0
        %1040 = vmatpush1.msra.mxu0 0.0
        %1041 = vmatprep.subr.mxu0 0.0
        %1042 = vmatpush1.msra.mxu0 0.0
        %1043 = vmatprep.subr.mxu0 0.0
        %1044 = vmatpush1.msra.mxu0 0.0
        %1045 = vmatprep.subr.mxu0 0.0
        %1046 = vmatpush1.msra.mxu0 0.0
        %1047 = vmatprep.subr.mxu0 0.0
        %1048 = vmatpush1.msra.mxu0 0.0
        %1049 = vmatprep.subr.mxu0 0.0
        %1050 = vmatpush1.msra.mxu0 0.0
        %1051 = vmatprep.subr.mxu0 0.0
        %1052 = vmatpush1.msra.mxu0 0.0
        %1053 = vmatprep.subr.mxu0 0.0
        %1054 = vmatpush1.msra.mxu0 0.0
        %1055 = vmatprep.subr.mxu0 0.0
        %1056 = vmatpush1.msra.mxu0 0.0
        %1057 = vmatprep.subr.mxu0 0.0
        %1058 = vmatpush1.msra.mxu0 0.0
        %1059 = vmatprep.subr.mxu0 0.0
        %1060 = vmatpush1.msra.mxu0 0.0
        %1061 = vmatprep.subr.mxu0 0.0
        %1062 = vmatpush1.msra.mxu0 0.0
        %1063 = vmatprep.subr.mxu0 0.0
        %1064 = vmatpush1.msra.mxu0 0.0
        %1065 = vmatprep.subr.mxu0 0.0
        %1066 = vmatpush1.msra.mxu0 0.0
        %1067 = vmatprep.subr.mxu0 0.0
        %1068 = vmatpush1.msra.mxu0 0.0
        %1069 = vmatprep.subr.mxu0 0.0
        %1070 = vmatpush1.msra.mxu0 0.0
        %1071 = vmatprep.subr.mxu0 0.0
        %1072 = vmatpush1.msra.mxu0 0.0
        %1073 = vmatprep.subr.mxu0 0.0
        %1074 = vmatpush1.msra.mxu0 0.0
        %1075 = vmatprep.subr.mxu0 0.0
        %1076 = vmatpush1.msra.mxu0 0.0
        %1077 = vmatprep.subr.mxu0 0.0
        %1078 = vmatpush1.msra.mxu0 0.0
        %1079 = vmatprep.subr.mxu0 0.0
        %1080 = vmatpush1.msra.mxu0 0.0
        %1081 = vmatprep.mubr.f32.mxu0 0.0
        %1082 = vmatmul.mubr.f32.gmra.mrb[0].mxu0 %v382
        %v1083 = vpop.f32.mrb[0].mxu0
        %v1084 = vadd.f32 %v346, %v1083
        %v1085 = vpop.f32.mrb[0].mxu0
        %v1086 = vadd.f32 %v346, %v1085
        %1087 = vdwg.mxu0
        %1088 = vmatprep.subr.mxu0 %v423
        %1089 = vmatpush1.msra.mxu0 %v421
        %1090 = vmatprep.subr.mxu0 0.0
        %1091 = vmatpush1.msra.mxu0 0.0
        %1092 = vmatprep.subr.mxu0 0.0
        %1093 = vmatpush1.msra.mxu0 0.0
        %1094 = vmatprep.subr.mxu0 0.0
        %1095 = vmatpush1.msra.mxu0 0.0
        %1096 = vmatprep.subr.mxu0 0.0
        %1097 = vmatpush1.msra.mxu0 0.0
        %1098 = vmatprep.subr.mxu0 0.0
        %1099 = vmatpush1.msra.mxu0 0.0
        %1100 = vmatprep.subr.mxu0 0.0
        %1101 = vmatpush1.msra.mxu0 0.0
        %1102 = vmatprep.subr.mxu0 0.0
        %1103 = vmatpush1.msra.mxu0 0.0
        %1104 = vmatprep.subr.mxu0 0.0
        %1105 = vmatpush1.msra.mxu0 0.0
        %1106 = vmatprep.subr.mxu0 0.0
        %1107 = vmatpush1.msra.mxu0 0.0
        %1108 = vmatprep.subr.mxu0 0.0
        %1109 = vmatpush1.msra.mxu0 0.0
        %1110 = vmatprep.subr.mxu0 0.0
        %1111 = vmatpush1.msra.mxu0 0.0
        %1112 = vmatprep.subr.mxu0 0.0
        %1113 = vmatpush1.msra.mxu0 0.0
        %1114 = vmatprep.subr.mxu0 0.0
        %1115 = vmatpush1.msra.mxu0 0.0
        %1116 = vmatprep.subr.mxu0 0.0
        %1117 = vmatpush1.msra.mxu0 0.0
        %1118 = vmatprep.subr.mxu0 0.0
        %1119 = vmatpush1.msra.mxu0 0.0
        %1120 = vmatprep.subr.mxu0 0.0
        %1121 = vmatpush1.msra.mxu0 0.0
        %1122 = vmatprep.subr.mxu0 0.0
        %1123 = vmatpush1.msra.mxu0 0.0
        %1124 = vmatprep.subr.mxu0 0.0
        %1125 = vmatpush1.msra.mxu0 0.0
        %1126 = vmatprep.subr.mxu0 0.0
        %1127 = vmatpush1.msra.mxu0 0.0
        %1128 = vmatprep.subr.mxu0 0.0
        %1129 = vmatpush1.msra.mxu0 0.0
        %1130 = vmatprep.subr.mxu0 0.0
        %1131 = vmatpush1.msra.mxu0 0.0
        %1132 = vmatprep.subr.mxu0 0.0
        %1133 = vmatpush1.msra.mxu0 0.0
        %1134 = vmatprep.subr.mxu0 0.0
        %1135 = vmatpush1.msra.mxu0 0.0
        %1136 = vmatprep.subr.mxu0 0.0
        %1137 = vmatpush1.msra.mxu0 0.0
        %1138 = vmatprep.subr.mxu0 0.0
        %1139 = vmatpush1.msra.mxu0 0.0
        %1140 = vmatprep.subr.mxu0 0.0
        %1141 = vmatpush1.msra.mxu0 0.0
        %1142 = vmatprep.subr.mxu0 0.0
        %1143 = vmatpush1.msra.mxu0 0.0
        %1144 = vmatprep.subr.mxu0 0.0
        %1145 = vmatpush1.msra.mxu0 0.0
        %1146 = vmatprep.subr.mxu0 0.0
        %1147 = vmatpush1.msra.mxu0 0.0
        %1148 = vmatprep.subr.mxu0 0.0
        %1149 = vmatpush1.msra.mxu0 0.0
        %1150 = vmatprep.subr.mxu0 0.0
        %1151 = vmatpush1.msra.mxu0 0.0
        %1152 = vmatprep.mubr.f32.mxu0 0.0
        %1153 = vmatmul.mubr.f32.gmra.mrb[0].mxu0 %v382
        %v1154 = vpop.f32.mrb[0].mxu0
        %v1155 = vadd.f32 %v346, %v1154
        %v1156 = vpop.f32.mrb[0].mxu0
        %v1157 = vadd.f32 %v346, %v1156
        %1158 = vdwg.mxu0
        %1159 = vmatprep.subr.mxu0 %v427
        %1160 = vmatpush1.msra.mxu0 %v425
        %1161 = vmatprep.subr.mxu0 0.0
        %1162 = vmatpush1.msra.mxu0 0.0
        %1163 = vmatprep.subr.mxu0 0.0
        %1164 = vmatpush1.msra.mxu0 0.0
        %1165 = vmatprep.subr.mxu0 0.0
        %1166 = vmatpush1.msra.mxu0 0.0
        %1167 = vmatprep.subr.mxu0 0.0
        %1168 = vmatpush1.msra.mxu0 0.0
        %1169 = vmatprep.subr.mxu0 0.0
        %1170 = vmatpush1.msra.mxu0 0.0
        %1171 = vmatprep.subr.mxu0 0.0
        %1172 = vmatpush1.msra.mxu0 0.0
        %1173 = vmatprep.subr.mxu0 0.0
        %1174 = vmatpush1.msra.mxu0 0.0
        %1175 = vmatprep.subr.mxu0 0.0
        %1176 = vmatpush1.msra.mxu0 0.0
        %1177 = vmatprep.subr.mxu0 0.0
        %1178 = vmatpush1.msra.mxu0 0.0
        %1179 = vmatprep.subr.mxu0 0.0
        %1180 = vmatpush1.msra.mxu0 0.0
        %1181 = vmatprep.subr.mxu0 0.0
        %1182 = vmatpush1.msra.mxu0 0.0
        %1183 = vmatprep.subr.mxu0 0.0
        %1184 = vmatpush1.msra.mxu0 0.0
        %1185 = vmatprep.subr.mxu0 0.0
        %1186 = vmatpush1.msra.mxu0 0.0
        %1187 = vmatprep.subr.mxu0 0.0
        %1188 = vmatpush1.msra.mxu0 0.0
        %1189 = vmatprep.subr.mxu0 0.0
        %1190 = vmatpush1.msra.mxu0 0.0
        %1191 = vmatprep.subr.mxu0 0.0
        %1192 = vmatpush1.msra.mxu0 0.0
        %1193 = vmatprep.subr.mxu0 0.0
        %1194 = vmatpush1.msra.mxu0 0.0
        %1195 = vmatprep.subr.mxu0 0.0
        %1196 = vmatpush1.msra.mxu0 0.0
        %1197 = vmatprep.subr.mxu0 0.0
        %1198 = vmatpush1.msra.mxu0 0.0
        %1199 = vmatprep.subr.mxu0 0.0
        %1200 = vmatpush1.msra.mxu0 0.0
        %1201 = vmatprep.subr.mxu0 0.0
        %1202 = vmatpush1.msra.mxu0 0.0
        %1203 = vmatprep.subr.mxu0 0.0
        %1204 = vmatpush1.msra.mxu0 0.0
        %1205 = vmatprep.subr.mxu0 0.0
        %1206 = vmatpush1.msra.mxu0 0.0
        %1207 = vmatprep.subr.mxu0 0.0
        %1208 = vmatpush1.msra.mxu0 0.0
        %1209 = vmatprep.subr.mxu0 0.0
        %1210 = vmatpush1.msra.mxu0 0.0
        %1211 = vmatprep.subr.mxu0 0.0
        %1212 = vmatpush1.msra.mxu0 0.0
        %1213 = vmatprep.subr.mxu0 0.0
        %1214 = vmatpush1.msra.mxu0 0.0
        %1215 = vmatprep.subr.mxu0 0.0
        %1216 = vmatpush1.msra.mxu0 0.0
        %1217 = vmatprep.subr.mxu0 0.0
        %1218 = vmatpush1.msra.mxu0 0.0
        %1219 = vmatprep.subr.mxu0 0.0
        %1220 = vmatpush1.msra.mxu0 0.0
        %1221 = vmatprep.subr.mxu0 0.0
        %1222 = vmatpush1.msra.mxu0 0.0
        %1223 = vmatprep.mubr.f32.mxu0 0.0
        %1224 = vmatmul.mubr.f32.gmra.mrb[0].mxu0 %v382
        %v1225 = vpop.f32.mrb[0].mxu0
        %v1226 = vadd.f32 %v346, %v1225
        %v1227 = vpop.f32.mrb[0].mxu0
        %v1228 = vadd.f32 %v346, %v1227
        %1229 = vdwg.mxu0
        %1230 = vmatprep.subr.mxu0 %v431
        %1231 = vmatpush1.msra.mxu0 %v429
        %1232 = vmatprep.subr.mxu0 0.0
        %1233 = vmatpush1.msra.mxu0 0.0
        %1234 = vmatprep.subr.mxu0 0.0
        %1235 = vmatpush1.msra.mxu0 0.0
        %1236 = vmatprep.subr.mxu0 0.0
        %1237 = vmatpush1.msra.mxu0 0.0
        %1238 = vmatprep.subr.mxu0 0.0
        %1239 = vmatpush1.msra.mxu0 0.0
        %1240 = vmatprep.subr.mxu0 0.0
        %1241 = vmatpush1.msra.mxu0 0.0
        %1242 = vmatprep.subr.mxu0 0.0
        %1243 = vmatpush1.msra.mxu0 0.0
        %1244 = vmatprep.subr.mxu0 0.0
        %1245 = vmatpush1.msra.mxu0 0.0
        %1246 = vmatprep.subr.mxu0 0.0
        %1247 = vmatpush1.msra.mxu0 0.0
        %1248 = vmatprep.subr.mxu0 0.0
        %1249 = vmatpush1.msra.mxu0 0.0
        %1250 = vmatprep.subr.mxu0 0.0
        %1251 = vmatpush1.msra.mxu0 0.0
        %1252 = vmatprep.subr.mxu0 0.0
        %1253 = vmatpush1.msra.mxu0 0.0
        %1254 = vmatprep.subr.mxu0 0.0
        %1255 = vmatpush1.msra.mxu0 0.0
        %1256 = vmatprep.subr.mxu0 0.0
        %1257 = vmatpush1.msra.mxu0 0.0
        %1258 = vmatprep.subr.mxu0 0.0
        %1259 = vmatpush1.msra.mxu0 0.0
        %1260 = vmatprep.subr.mxu0 0.0
        %1261 = vmatpush1.msra.mxu0 0.0
        %1262 = vmatprep.subr.mxu0 0.0
        %1263 = vmatpush1.msra.mxu0 0.0
        %1264 = vmatprep.subr.mxu0 0.0
        %1265 = vmatpush1.msra.mxu0 0.0
        %1266 = vmatprep.subr.mxu0 0.0
        %1267 = vmatpush1.msra.mxu0 0.0
        %1268 = vmatprep.subr.mxu0 0.0
        %1269 = vmatpush1.msra.mxu0 0.0
        %1270 = vmatprep.subr.mxu0 0.0
        %1271 = vmatpush1.msra.mxu0 0.0
        %1272 = vmatprep.subr.mxu0 0.0
        %1273 = vmatpush1.msra.mxu0 0.0
        %1274 = vmatprep.subr.mxu0 0.0
        %1275 = vmatpush1.msra.mxu0 0.0
        %1276 = vmatprep.subr.mxu0 0.0
        %1277 = vmatpush1.msra.mxu0 0.0
        %1278 = vmatprep.subr.mxu0 0.0
        %1279 = vmatpush1.msra.mxu0 0.0
        %1280 = vmatprep.subr.mxu0 0.0
        %1281 = vmatpush1.msra.mxu0 0.0
        %1282 = vmatprep.subr.mxu0 0.0
        %1283 = vmatpush1.msra.mxu0 0.0
        %1284 = vmatprep.subr.mxu0 0.0
        %1285 = vmatpush1.msra.mxu0 0.0
        %1286 = vmatprep.subr.mxu0 0.0
        %1287 = vmatpush1.msra.mxu0 0.0
        %1288 = vmatprep.subr.mxu0 0.0
        %1289 = vmatpush1.msra.mxu0 0.0
        %1290 = vmatprep.subr.mxu0 0.0
        %1291 = vmatpush1.msra.mxu0 0.0
        %1292 = vmatprep.subr.mxu0 0.0
        %1293 = vmatpush1.msra.mxu0 0.0
        %1294 = vmatprep.mubr.f32.mxu0 0.0
        %1295 = vmatmul.mubr.f32.gmra.mrb[0].mxu0 %v382
        %v1296 = vpop.f32.mrb[0].mxu0
        %v1297 = vadd.f32 %v346, %v1296
        %v1298 = vpop.f32.mrb[0].mxu0
        %v1299 = vadd.f32 %v346, %v1298
        %1300 = vdwg.mxu0
        %1301 = vmatprep.subr.mxu0 %v435
        %1302 = vmatpush1.msra.mxu0 %v433
        %1303 = vmatprep.subr.mxu0 0.0
        %1304 = vmatpush1.msra.mxu0 0.0
        %1305 = vmatprep.subr.mxu0 0.0
        %1306 = vmatpush1.msra.mxu0 0.0
        %1307 = vmatprep.subr.mxu0 0.0
        %1308 = vmatpush1.msra.mxu0 0.0
        %1309 = vmatprep.subr.mxu0 0.0
        %1310 = vmatpush1.msra.mxu0 0.0
        %1311 = vmatprep.subr.mxu0 0.0
        %1312 = vmatpush1.msra.mxu0 0.0
        %1313 = vmatprep.subr.mxu0 0.0
        %1314 = vmatpush1.msra.mxu0 0.0
        %1315 = vmatprep.subr.mxu0 0.0
        %1316 = vmatpush1.msra.mxu0 0.0
        %1317 = vmatprep.subr.mxu0 0.0
        %1318 = vmatpush1.msra.mxu0 0.0
        %1319 = vmatprep.subr.mxu0 0.0
        %1320 = vmatpush1.msra.mxu0 0.0
        %1321 = vmatprep.subr.mxu0 0.0
        %1322 = vmatpush1.msra.mxu0 0.0
        %1323 = vmatprep.subr.mxu0 0.0
        %1324 = vmatpush1.msra.mxu0 0.0
        %1325 = vmatprep.subr.mxu0 0.0
        %1326 = vmatpush1.msra.mxu0 0.0
        %1327 = vmatprep.subr.mxu0 0.0
        %1328 = vmatpush1.msra.mxu0 0.0
        %1329 = vmatprep.subr.mxu0 0.0
        %1330 = vmatpush1.msra.mxu0 0.0
        %1331 = vmatprep.subr.mxu0 0.0
        %1332 = vmatpush1.msra.mxu0 0.0
        %1333 = vmatprep.subr.mxu0 0.0
        %1334 = vmatpush1.msra.mxu0 0.0
        %1335 = vmatprep.subr.mxu0 0.0
        %1336 = vmatpush1.msra.mxu0 0.0
        %1337 = vmatprep.subr.mxu0 0.0
        %1338 = vmatpush1.msra.mxu0 0.0
        %1339 = vmatprep.subr.mxu0 0.0
        %1340 = vmatpush1.msra.mxu0 0.0
        %1341 = vmatprep.subr.mxu0 0.0
        %1342 = vmatpush1.msra.mxu0 0.0
        %1343 = vmatprep.subr.mxu0 0.0
        %1344 = vmatpush1.msra.mxu0 0.0
        %1345 = vmatprep.subr.mxu0 0.0
        %1346 = vmatpush1.msra.mxu0 0.0
        %1347 = vmatprep.subr.mxu0 0.0
        %1348 = vmatpush1.msra.mxu0 0.0
        %1349 = vmatprep.subr.mxu0 0.0
        %1350 = vmatpush1.msra.mxu0 0.0
        %1351 = vmatprep.subr.mxu0 0.0
        %1352 = vmatpush1.msra.mxu0 0.0
        %1353 = vmatprep.subr.mxu0 0.0
        %1354 = vmatpush1.msra.mxu0 0.0
        %1355 = vmatprep.subr.mxu0 0.0
        %1356 = vmatpush1.msra.mxu0 0.0
        %1357 = vmatprep.subr.mxu0 0.0
        %1358 = vmatpush1.msra.mxu0 0.0
        %1359 = vmatprep.subr.mxu0 0.0
        %1360 = vmatpush1.msra.mxu0 0.0
        %1361 = vmatprep.subr.mxu0 0.0
        %1362 = vmatpush1.msra.mxu0 0.0
        %1363 = vmatprep.subr.mxu0 0.0
        %1364 = vmatpush1.msra.mxu0 0.0
        %1365 = vmatprep.mubr.f32.mxu0 0.0
        %1366 = vmatmul.mubr.f32.gmra.mrb[0].mxu0 %v382
        %v1367 = vpop.f32.mrb[0].mxu0
        %v1368 = vadd.f32 %v346, %v1367
        %v1369 = vpop.f32.mrb[0].mxu0
        %v1370 = vadd.f32 %v346, %v1369
        %1371 = vdwg.mxu0
        %1372 = vmatprep.subr.mxu0 %v439
        %1373 = vmatpush1.msra.mxu0 %v437
        %1374 = vmatprep.subr.mxu0 0.0
        %1375 = vmatpush1.msra.mxu0 0.0
        %1376 = vmatprep.subr.mxu0 0.0
        %1377 = vmatpush1.msra.mxu0 0.0
        %1378 = vmatprep.subr.mxu0 0.0
        %1379 = vmatpush1.msra.mxu0 0.0
        %1380 = vmatprep.subr.mxu0 0.0
        %1381 = vmatpush1.msra.mxu0 0.0
        %1382 = vmatprep.subr.mxu0 0.0
        %1383 = vmatpush1.msra.mxu0 0.0
        %1384 = vmatprep.subr.mxu0 0.0
        %1385 = vmatpush1.msra.mxu0 0.0
        %1386 = vmatprep.subr.mxu0 0.0
        %1387 = vmatpush1.msra.mxu0 0.0
        %1388 = vmatprep.subr.mxu0 0.0
        %1389 = vmatpush1.msra.mxu0 0.0
        %1390 = vmatprep.subr.mxu0 0.0
        %1391 = vmatpush1.msra.mxu0 0.0
        %1392 = vmatprep.subr.mxu0 0.0
        %1393 = vmatpush1.msra.mxu0 0.0
        %1394 = vmatprep.subr.mxu0 0.0
        %1395 = vmatpush1.msra.mxu0 0.0
        %1396 = vmatprep.subr.mxu0 0.0
        %1397 = vmatpush1.msra.mxu0 0.0
        %1398 = vmatprep.subr.mxu0 0.0
        %1399 = vmatpush1.msra.mxu0 0.0
        %1400 = vmatprep.subr.mxu0 0.0
        %1401 = vmatpush1.msra.mxu0 0.0
        %1402 = vmatprep.subr.mxu0 0.0
        %1403 = vmatpush1.msra.mxu0 0.0
        %1404 = vmatprep.subr.mxu0 0.0
        %1405 = vmatpush1.msra.mxu0 0.0
        %1406 = vmatprep.subr.mxu0 0.0
        %1407 = vmatpush1.msra.mxu0 0.0
        %1408 = vmatprep.subr.mxu0 0.0
        %1409 = vmatpush1.msra.mxu0 0.0
        %1410 = vmatprep.subr.mxu0 0.0
        %1411 = vmatpush1.msra.mxu0 0.0
        %1412 = vmatprep.subr.mxu0 0.0
        %1413 = vmatpush1.msra.mxu0 0.0
        %1414 = vmatprep.subr.mxu0 0.0
        %1415 = vmatpush1.msra.mxu0 0.0
        %1416 = vmatprep.subr.mxu0 0.0
        %1417 = vmatpush1.msra.mxu0 0.0
        %1418 = vmatprep.subr.mxu0 0.0
        %1419 = vmatpush1.msra.mxu0 0.0
        %1420 = vmatprep.subr.mxu0 0.0
        %1421 = vmatpush1.msra.mxu0 0.0
        %1422 = vmatprep.subr.mxu0 0.0
        %1423 = vmatpush1.msra.mxu0 0.0
        %1424 = vmatprep.subr.mxu0 0.0
        %1425 = vmatpush1.msra.mxu0 0.0
        %1426 = vmatprep.subr.mxu0 0.0
        %1427 = vmatpush1.msra.mxu0 0.0
        %1428 = vmatprep.subr.mxu0 0.0
        %1429 = vmatpush1.msra.mxu0 0.0
        %1430 = vmatprep.subr.mxu0 0.0
        %1431 = vmatpush1.msra.mxu0 0.0
        %1432 = vmatprep.subr.mxu0 0.0
        %1433 = vmatpush1.msra.mxu0 0.0
        %1434 = vmatprep.subr.mxu0 0.0
        %1435 = vmatpush1.msra.mxu0 0.0
        %1436 = vmatprep.mubr.f32.mxu0 0.0
        %1437 = vmatmul.mubr.f32.gmra.mrb[0].mxu0 %v382
        %v1438 = vpop.f32.mrb[0].mxu0
        %v1439 = vadd.f32 %v346, %v1438
        %v1440 = vpop.f32.mrb[0].mxu0
        %v1441 = vadd.f32 %v346, %v1440
        %1442 = vdwg.mxu0
        %1443 = vmatprep.subr.mxu0 %v443
        %1444 = vmatpush1.msra.mxu0 %v441
        %1445 = vmatprep.subr.mxu0 0.0
        %1446 = vmatpush1.msra.mxu0 0.0
        %1447 = vmatprep.subr.mxu0 0.0
        %1448 = vmatpush1.msra.mxu0 0.0
        %1449 = vmatprep.subr.mxu0 0.0
        %1450 = vmatpush1.msra.mxu0 0.0
        %1451 = vmatprep.subr.mxu0 0.0
        %1452 = vmatpush1.msra.mxu0 0.0
        %1453 = vmatprep.subr.mxu0 0.0
        %1454 = vmatpush1.msra.mxu0 0.0
        %1455 = vmatprep.subr.mxu0 0.0
        %1456 = vmatpush1.msra.mxu0 0.0
        %1457 = vmatprep.subr.mxu0 0.0
        %1458 = vmatpush1.msra.mxu0 0.0
        %1459 = vmatprep.subr.mxu0 0.0
        %1460 = vmatpush1.msra.mxu0 0.0
        %1461 = vmatprep.subr.mxu0 0.0
        %1462 = vmatpush1.msra.mxu0 0.0
        %1463 = vmatprep.subr.mxu0 0.0
        %1464 = vmatpush1.msra.mxu0 0.0
        %1465 = vmatprep.subr.mxu0 0.0
        %1466 = vmatpush1.msra.mxu0 0.0
        %1467 = vmatprep.subr.mxu0 0.0
        %1468 = vmatpush1.msra.mxu0 0.0
        %1469 = vmatprep.subr.mxu0 0.0
        %1470 = vmatpush1.msra.mxu0 0.0
        %1471 = vmatprep.subr.mxu0 0.0
        %1472 = vmatpush1.msra.mxu0 0.0
        %1473 = vmatprep.subr.mxu0 0.0
        %1474 = vmatpush1.msra.mxu0 0.0
        %1475 = vmatprep.subr.mxu0 0.0
        %1476 = vmatpush1.msra.mxu0 0.0
        %1477 = vmatprep.subr.mxu0 0.0
        %1478 = vmatpush1.msra.mxu0 0.0
        %1479 = vmatprep.subr.mxu0 0.0
        %1480 = vmatpush1.msra.mxu0 0.0
        %1481 = vmatprep.subr.mxu0 0.0
        %1482 = vmatpush1.msra.mxu0 0.0
        %1483 = vmatprep.subr.mxu0 0.0
        %1484 = vmatpush1.msra.mxu0 0.0
        %1485 = vmatprep.subr.mxu0 0.0
        %1486 = vmatpush1.msra.mxu0 0.0
        %1487 = vmatprep.subr.mxu0 0.0
        %1488 = vmatpush1.msra.mxu0 0.0
        %1489 = vmatprep.subr.mxu0 0.0
        %1490 = vmatpush1.msra.mxu0 0.0
        %1491 = vmatprep.subr.mxu0 0.0
        %1492 = vmatpush1.msra.mxu0 0.0
        %1493 = vmatprep.subr.mxu0 0.0
        %1494 = vmatpush1.msra.mxu0 0.0
        %1495 = vmatprep.subr.mxu0 0.0
        %1496 = vmatpush1.msra.mxu0 0.0
        %1497 = vmatprep.subr.mxu0 0.0
        %1498 = vmatpush1.msra.mxu0 0.0
        %1499 = vmatprep.subr.mxu0 0.0
        %1500 = vmatpush1.msra.mxu0 0.0
        %1501 = vmatprep.subr.mxu0 0.0
        %1502 = vmatpush1.msra.mxu0 0.0
        %1503 = vmatprep.subr.mxu0 0.0
        %1504 = vmatpush1.msra.mxu0 0.0
        %1505 = vmatprep.subr.mxu0 0.0
        %1506 = vmatpush1.msra.mxu0 0.0
        %1507 = vmatprep.mubr.f32.mxu0 0.0
        %1508 = vmatmul.mubr.f32.gmra.mrb[0].mxu0 %v382
        %v1509 = vpop.f32.mrb[0].mxu0
        %v1510 = vadd.f32 %v346, %v1509
        %v1511 = vpop.f32.mrb[0].mxu0
        %v1512 = vadd.f32 %v346, %v1511
        %1513 = vdwg.mxu0
        %1514 = vmatprep.subr.mxu0 %v447
        %1515 = vmatpush1.msra.mxu0 %v445
        %1516 = vmatprep.subr.mxu0 0.0
        %1517 = vmatpush1.msra.mxu0 0.0
        %1518 = vmatprep.subr.mxu0 0.0
        %1519 = vmatpush1.msra.mxu0 0.0
        %1520 = vmatprep.subr.mxu0 0.0
        %1521 = vmatpush1.msra.mxu0 0.0
        %1522 = vmatprep.subr.mxu0 0.0
        %1523 = vmatpush1.msra.mxu0 0.0
        %1524 = vmatprep.subr.mxu0 0.0
        %1525 = vmatpush1.msra.mxu0 0.0
        %1526 = vmatprep.subr.mxu0 0.0
        %1527 = vmatpush1.msra.mxu0 0.0
        %1528 = vmatprep.subr.mxu0 0.0
        %1529 = vmatpush1.msra.mxu0 0.0
        %1530 = vmatprep.subr.mxu0 0.0
        %1531 = vmatpush1.msra.mxu0 0.0
        %1532 = vmatprep.subr.mxu0 0.0
        %1533 = vmatpush1.msra.mxu0 0.0
        %1534 = vmatprep.subr.mxu0 0.0
        %1535 = vmatpush1.msra.mxu0 0.0
        %1536 = vmatprep.subr.mxu0 0.0
        %1537 = vmatpush1.msra.mxu0 0.0
        %1538 = vmatprep.subr.mxu0 0.0
        %1539 = vmatpush1.msra.mxu0 0.0
        %1540 = vmatprep.subr.mxu0 0.0
        %1541 = vmatpush1.msra.mxu0 0.0
        %1542 = vmatprep.subr.mxu0 0.0
        %1543 = vmatpush1.msra.mxu0 0.0
        %1544 = vmatprep.subr.mxu0 0.0
        %1545 = vmatpush1.msra.mxu0 0.0
        %1546 = vmatprep.subr.mxu0 0.0
        %1547 = vmatpush1.msra.mxu0 0.0
        %1548 = vmatprep.subr.mxu0 0.0
        %1549 = vmatpush1.msra.mxu0 0.0
        %1550 = vmatprep.subr.mxu0 0.0
        %1551 = vmatpush1.msra.mxu0 0.0
        %1552 = vmatprep.subr.mxu0 0.0
        %1553 = vmatpush1.msra.mxu0 0.0
        %1554 = vmatprep.subr.mxu0 0.0
        %1555 = vmatpush1.msra.mxu0 0.0
        %1556 = vmatprep.subr.mxu0 0.0
        %1557 = vmatpush1.msra.mxu0 0.0
        %1558 = vmatprep.subr.mxu0 0.0
        %1559 = vmatpush1.msra.mxu0 0.0
        %1560 = vmatprep.subr.mxu0 0.0
        %1561 = vmatpush1.msra.mxu0 0.0
        %1562 = vmatprep.subr.mxu0 0.0
        %1563 = vmatpush1.msra.mxu0 0.0
        %1564 = vmatprep.subr.mxu0 0.0
        %1565 = vmatpush1.msra.mxu0 0.0
        %1566 = vmatprep.subr.mxu0 0.0
        %1567 = vmatpush1.msra.mxu0 0.0
        %1568 = vmatprep.subr.mxu0 0.0
        %1569 = vmatpush1.msra.mxu0 0.0
        %1570 = vmatprep.subr.mxu0 0.0
        %1571 = vmatpush1.msra.mxu0 0.0
        %1572 = vmatprep.subr.mxu0 0.0
        %1573 = vmatpush1.msra.mxu0 0.0
        %1574 = vmatprep.subr.mxu0 0.0
        %1575 = vmatpush1.msra.mxu0 0.0
        %1576 = vmatprep.subr.mxu0 0.0
        %1577 = vmatpush1.msra.mxu0 0.0
        %1578 = vmatprep.mubr.f32.mxu0 0.0
        %1579 = vmatmul.mubr.f32.gmra.mrb[0].mxu0 %v382
        %v1580 = vpop.f32.mrb[0].mxu0
        %v1581 = vadd.f32 %v346, %v1580
        %v1582 = vpop.f32.mrb[0].mxu0
        %v1583 = vadd.f32 %v346, %v1582
        %1584 = vdwg.mxu0
        %v1585 = vmax.f32 %v516, 0.0
        %v1586 = vmax.f32 %v518, 0.0
        %v1587 = vmax.f32 %v587, 0.0
        %v1588 = vmax.f32 %v589, 0.0
        %v1589 = vmax.f32 %v658, 0.0
        %v1590 = vmax.f32 %v660, 0.0
        %v1591 = vmax.f32 %v729, 0.0
        %v1592 = vmax.f32 %v731, 0.0
        %v1593 = vmax.f32 %v800, 0.0
        %v1594 = vmax.f32 %v802, 0.0
        %v1595 = vmax.f32 %v871, 0.0
        %v1596 = vmax.f32 %v873, 0.0
        %v1597 = vmax.f32 %v942, 0.0
        %v1598 = vmax.f32 %v944, 0.0
        %v1599 = vmax.f32 %v1013, 0.0
        %v1600 = vmax.f32 %v1015, 0.0
        %v1601 = vmax.f32 %v1084, 0.0
        %v1602 = vmax.f32 %v1086, 0.0
        %v1603 = vmax.f32 %v1155, 0.0
        %v1604 = vmax.f32 %v1157, 0.0
        %v1605 = vmax.f32 %v1226, 0.0
        %v1606 = vmax.f32 %v1228, 0.0
        %v1607 = vmax.f32 %v1297, 0.0
        %v1608 = vmax.f32 %v1299, 0.0
        %v1609 = vmax.f32 %v1368, 0.0
        %v1610 = vmax.f32 %v1370, 0.0
        %v1611 = vmax.f32 %v1439, 0.0
        %v1612 = vmax.f32 %v1441, 0.0
        %v1613 = vmax.f32 %v1510, 0.0
        %v1614 = vmax.f32 %v1512, 0.0
        %v1615 = vmax.f32 %v1581, 0.0
        %v1616 = vmax.f32 %v1583, 0.0
        %p1617 = scmp.eq.s32.totalorder %s30, 0
        // Predicated region
        $region53: #{tpu_custom_call.1} parent=47 // pred_check
          %p1618 = pneg %p1617
        $region54: #{tpu_custom_call.1} parent=47 // pred_check_branch
          %1620 = sbr.rel (%p1618) target = $region56
        $region55: #{tpu_custom_call.1} parent=47 // pred_region
          %p1621 = scmp.eq.s32.totalorder %s31, 0
          // Predicated region
          $region57: #{tpu_custom_call.1} parent=55 // pred_check
            %p1622 = pneg %p1621
          $region58: #{tpu_custom_call.1} parent=55 // pred_check_branch
            %1624 = sbr.rel (%p1622) target = $region60
          $region59: #{tpu_custom_call.1} parent=55 // pred_region
            %v1625 = vadd.f32 %v1585, %v1586
            %v1626 = vadd.f32 %v1625, %v1587
            %v1627 = vadd.f32 %v1626, %v1588
            %v1628 = vadd.f32 %v1627, %v1589
            %v1629 = vadd.f32 %v1628, %v1590
            %v1630 = vadd.f32 %v1629, %v1591
            %v1631 = vadd.f32 %v1630, %v1592
            %v1632 = vadd.f32 %v1631, %v1593
            %v1633 = vadd.f32 %v1632, %v1594
            %v1634 = vadd.f32 %v1633, %v1595
            %v1635 = vadd.f32 %v1634, %v1596
            %v1636 = vadd.f32 %v1635, %v1597
            %v1637 = vadd.f32 %v1636, %v1598
            %v1638 = vadd.f32 %v1637, %v1599
            %v1639 = vadd.f32 %v1638, %v1600
            %v1640 = vadd.f32 %v1639, %v1601
            %v1641 = vadd.f32 %v1640, %v1602
            %v1642 = vadd.f32 %v1641, %v1603
            %v1643 = vadd.f32 %v1642, %v1604
            %v1644 = vadd.f32 %v1643, %v1605
            %v1645 = vadd.f32 %v1644, %v1606
            %v1646 = vadd.f32 %v1645, %v1607
            %v1647 = vadd.f32 %v1646, %v1608
            %v1648 = vadd.f32 %v1647, %v1609
            %v1649 = vadd.f32 %v1648, %v1610
            %v1650 = vadd.f32 %v1649, %v1611
            %v1651 = vadd.f32 %v1650, %v1612
            %v1652 = vadd.f32 %v1651, %v1613
            %v1653 = vadd.f32 %v1652, %v1614
            %v1654 = vadd.f32 %v1653, %v1615
            %v1655 = vadd.f32 %v1654, %v1616
            %1656 = vadd.xlane.f32.xlu0 %v1655
            %v1657 = vpop.xlane.xlu0 %1656
            %v1658 = vmul.f32 %v1657, 0.00024414063
            %vm1659 = vcmask 7168
            %1660 = vst.msk [vmem:[#allocation3] sm:$0xff] %vm1659, %v1658
            %1661 = vst.msk [vmem:[#allocation2] sm:$0xff] %vm1659, 0.0
            %1662 = vst.msk [vmem:[#allocation2 + $0x8] sm:$0xff] %vm1659, 0.0
          $region60: #{tpu_custom_call.1} parent=55 // pred_fallthru
            _
          %v1663 = vld [vmem:[#allocation3] sm:$0xff]
          %1665 = vset.pattern.permute.xlu0 0
          %1666 = vperm.xlu0 %1665, %v1663
          %v1667 = vpop.permute.xlu0 %1666
          %v1669 = vsub.f32 %v1585, %v1667
          %v1670 = vsub.f32 %v1586, %v1667
          %v1671 = vsub.f32 %v1587, %v1667
          %v1672 = vsub.f32 %v1588, %v1667
          %v1673 = vsub.f32 %v1589, %v1667
          %v1674 = vsub.f32 %v1590, %v1667
          %v1675 = vsub.f32 %v1591, %v1667
          %v1676 = vsub.f32 %v1592, %v1667
          %v1677 = vsub.f32 %v1593, %v1667
          %v1678 = vsub.f32 %v1594, %v1667
          %v1679 = vsub.f32 %v1595, %v1667
          %v1680 = vsub.f32 %v1596, %v1667
          %v1681 = vsub.f32 %v1597, %v1667
          %v1682 = vsub.f32 %v1598, %v1667
          %v1683 = vsub.f32 %v1599, %v1667
          %v1684 = vsub.f32 %v1600, %v1667
          %v1685 = vsub.f32 %v1601, %v1667
          %v1686 = vsub.f32 %v1602, %v1667
          %v1687 = vsub.f32 %v1603, %v1667
          %v1688 = vsub.f32 %v1604, %v1667
          %v1689 = vsub.f32 %v1605, %v1667
          %v1690 = vsub.f32 %v1606, %v1667
          %v1691 = vsub.f32 %v1607, %v1667
          %v1692 = vsub.f32 %v1608, %v1667
          %v1693 = vsub.f32 %v1609, %v1667
          %v1694 = vsub.f32 %v1610, %v1667
          %v1695 = vsub.f32 %v1611, %v1667
          %v1696 = vsub.f32 %v1612, %v1667
          %v1697 = vsub.f32 %v1613, %v1667
          %v1698 = vsub.f32 %v1614, %v1667
          %v1699 = vsub.f32 %v1615, %v1667
          %v1700 = vsub.f32 %v1616, %v1667
          %v1701 = vmul.f32 %v1669, %v1669
          %v1702 = vmul.f32 %v1670, %v1670
          %v1703 = vmul.f32 %v1671, %v1671
          %v1704 = vmul.f32 %v1672, %v1672
          %v1705 = vmul.f32 %v1673, %v1673
          %v1706 = vmul.f32 %v1674, %v1674
          %v1707 = vmul.f32 %v1675, %v1675
          %v1708 = vmul.f32 %v1676, %v1676
          %v1709 = vmul.f32 %v1677, %v1677
          %v1710 = vmul.f32 %v1678, %v1678
          %v1711 = vmul.f32 %v1679, %v1679
          %v1712 = vmul.f32 %v1680, %v1680
          %v1713 = vmul.f32 %v1681, %v1681
          %v1714 = vmul.f32 %v1682, %v1682
          %v1715 = vmul.f32 %v1683, %v1683
          %v1716 = vmul.f32 %v1684, %v1684
          %v1717 = vmul.f32 %v1685, %v1685
          %v1718 = vmul.f32 %v1686, %v1686
          %v1719 = vmul.f32 %v1687, %v1687
          %v1720 = vmul.f32 %v1688, %v1688
          %v1721 = vmul.f32 %v1689, %v1689
          %v1722 = vmul.f32 %v1690, %v1690
          %v1723 = vmul.f32 %v1691, %v1691
          %v1724 = vmul.f32 %v1692, %v1692
          %v1725 = vmul.f32 %v1693, %v1693
          %v1726 = vmul.f32 %v1694, %v1694
          %v1727 = vmul.f32 %v1695, %v1695
          %v1728 = vmul.f32 %v1696, %v1696
          %v1729 = vmul.f32 %v1697, %v1697
          %v1730 = vmul.f32 %v1698, %v1698
          %v1731 = vmul.f32 %v1699, %v1699
          %v1732 = vmul.f32 %v1700, %v1700
          %v1733 = vld [vmem:[#allocation2] sm:$0xff]
          %v1734 = vadd.f32 %v1669, %v1670
          %v1735 = vadd.f32 %v1734, %v1671
          %v1736 = vadd.f32 %v1735, %v1672
          %v1737 = vadd.f32 %v1736, %v1673
          %v1738 = vadd.f32 %v1737, %v1674
          %v1739 = vadd.f32 %v1738, %v1675
          %v1740 = vadd.f32 %v1739, %v1676
          %v1741 = vadd.f32 %v1740, %v1677
          %v1742 = vadd.f32 %v1741, %v1678
          %v1743 = vadd.f32 %v1742, %v1679
          %v1744 = vadd.f32 %v1743, %v1680
          %v1745 = vadd.f32 %v1744, %v1681
          %v1746 = vadd.f32 %v1745, %v1682
          %v1747 = vadd.f32 %v1746, %v1683
          %v1748 = vadd.f32 %v1747, %v1684
          %v1749 = vadd.f32 %v1748, %v1685
          %v1750 = vadd.f32 %v1749, %v1686
          %v1751 = vadd.f32 %v1750, %v1687
          %v1752 = vadd.f32 %v1751, %v1688
          %v1753 = vadd.f32 %v1752, %v1689
          %v1754 = vadd.f32 %v1753, %v1690
          %v1755 = vadd.f32 %v1754, %v1691
          %v1756 = vadd.f32 %v1755, %v1692
          %v1757 = vadd.f32 %v1756, %v1693
          %v1758 = vadd.f32 %v1757, %v1694
          %v1759 = vadd.f32 %v1758, %v1695
          %v1760 = vadd.f32 %v1759, %v1696
          %v1761 = vadd.f32 %v1760, %v1697
          %v1762 = vadd.f32 %v1761, %v1698
          %v1763 = vadd.f32 %v1762, %v1699
          %v1764 = vadd.f32 %v1763, %v1700
          %1765 = vadd.xlane.f32.xlu0 %v1764
          %v1766 = vpop.xlane.xlu0 %1765
          %v1767 = vadd.f32 %v1733, %v1766
          %vm1768 = vcmask 7168
          %1769 = vst.msk [vmem:[#allocation2] sm:$0xff] %vm1768, %v1767
          %v1770 = vld [vmem:[#allocation2 + $0x8] sm:$0xff]
          %v1771 = vadd.f32 %v1701, %v1702
          %v1772 = vadd.f32 %v1771, %v1703
          %v1773 = vadd.f32 %v1772, %v1704
          %v1774 = vadd.f32 %v1773, %v1705
          %v1775 = vadd.f32 %v1774, %v1706
          %v1776 = vadd.f32 %v1775, %v1707
          %v1777 = vadd.f32 %v1776, %v1708
          %v1778 = vadd.f32 %v1777, %v1709
          %v1779 = vadd.f32 %v1778, %v1710
          %v1780 = vadd.f32 %v1779, %v1711
          %v1781 = vadd.f32 %v1780, %v1712
          %v1782 = vadd.f32 %v1781, %v1713
          %v1783 = vadd.f32 %v1782, %v1714
          %v1784 = vadd.f32 %v1783, %v1715
          %v1785 = vadd.f32 %v1784, %v1716
          %v1786 = vadd.f32 %v1785, %v1717
          %v1787 = vadd.f32 %v1786, %v1718
          %v1788 = vadd.f32 %v1787, %v1719
          %v1789 = vadd.f32 %v1788, %v1720
          %v1790 = vadd.f32 %v1789, %v1721
          %v1791 = vadd.f32 %v1790, %v1722
          %v1792 = vadd.f32 %v1791, %v1723
          %v1793 = vadd.f32 %v1792, %v1724
          %v1794 = vadd.f32 %v1793, %v1725
          %v1795 = vadd.f32 %v1794, %v1726
          %v1796 = vadd.f32 %v1795, %v1727
          %v1797 = vadd.f32 %v1796, %v1728
          %v1798 = vadd.f32 %v1797, %v1729
          %v1799 = vadd.f32 %v1798, %v1730
          %v1800 = vadd.f32 %v1799, %v1731
          %v1801 = vadd.f32 %v1800, %v1732
          %1802 = vadd.xlane.f32.xlu0 %v1801
          %v1803 = vpop.xlane.xlu0 %1802
          %v1804 = vadd.f32 %v1770, %v1803
          %1805 = vst.msk [vmem:[#allocation2 + $0x8] sm:$0xff] %vm1768, %v1804
          // Predicated region
          $region61: #{tpu_custom_call.1} parent=55 // pred_check
            %p1806 = pneg %p1621
          $region62: #{tpu_custom_call.1} parent=55 // pred_check_branch
            %1808 = sbr.rel (%p1806) target = $region64
          $region63: #{tpu_custom_call.1} parent=55 // pred_region
            %v1809 = vld [vmem:[#allocation2] sm:$0xff]
            %v1810 = vmul.f32 %v1809, 0.00024414063
            %v1811 = vld [vmem:[#allocation3] sm:$0xff]
            %v1812 = vadd.f32 %v1811, %v1810
            %v1813 = vld [vmem:[#allocation2 + $0x8] sm:$0xff]
            %v1814 = vmul.f32 %v1813, 0.00024414063
            %v1815 = vmul.f32 %v1810, %v1810
            %v1816 = vsub.f32 %v1814, %v1815
            %v1817 = vmax.f32 %v1816, 0.0
            %v1818 = vld [vmem:[%s3] sm:$0xff]
            %v1819 = vld [vmem:[%s4] sm:$0xff]
            %vm1820 = vcmask 64512
            %v1822 = vsel %vm1820, %v1818, 0
            %1824 = vmatprep.subr.mxu0 0.0
            %1825 = vmatpush1.msra.mxu0 %v1812
            %1826 = vmatprep.subr.mxu0 0.0
            %1827 = vmatpush1.msra.mxu0 0.0
            %1828 = vmatprep.subr.mxu0 0.0
            %1829 = vmatpush1.msra.mxu0 0.0
            %1830 = vmatprep.subr.mxu0 0.0
            %1831 = vmatpush1.msra.mxu0 0.0
            %1832 = vmatprep.subr.mxu0 0.0
            %1833 = vmatpush1.msra.mxu0 0.0
            %1834 = vmatprep.subr.mxu0 0.0
            %1835 = vmatpush1.msra.mxu0 0.0
            %1836 = vmatprep.subr.mxu0 0.0
            %1837 = vmatpush1.msra.mxu0 0.0
            %1838 = vmatprep.subr.mxu0 0.0
            %1839 = vmatpush1.msra.mxu0 0.0
            %1840 = vmatprep.subr.mxu0 0.0
            %1841 = vmatpush1.msra.mxu0 0.0
            %1842 = vmatprep.subr.mxu0 0.0
            %1843 = vmatpush1.msra.mxu0 0.0
            %1844 = vmatprep.subr.mxu0 0.0
            %1845 = vmatpush1.msra.mxu0 0.0
            %1846 = vmatprep.subr.mxu0 0.0
            %1847 = vmatpush1.msra.mxu0 0.0
            %1848 = vmatprep.subr.mxu0 0.0
            %1849 = vmatpush1.msra.mxu0 0.0
            %1850 = vmatprep.subr.mxu0 0.0
            %1851 = vmatpush1.msra.mxu0 0.0
            %1852 = vmatprep.subr.mxu0 0.0
            %1853 = vmatpush1.msra.mxu0 0.0
            %1854 = vmatprep.subr.mxu0 0.0
            %1855 = vmatpush1.msra.mxu0 0.0
            %1856 = vmatprep.subr.mxu0 0.0
            %1857 = vmatpush1.msra.mxu0 0.0
            %1858 = vmatprep.subr.mxu0 0.0
            %1859 = vmatpush1.msra.mxu0 0.0
            %1860 = vmatprep.subr.mxu0 0.0
            %1861 = vmatpush1.msra.mxu0 0.0
            %1862 = vmatprep.subr.mxu0 0.0
            %1863 = vmatpush1.msra.mxu0 0.0
            %1864 = vmatprep.subr.mxu0 0.0
            %1865 = vmatpush1.msra.mxu0 0.0
            %1866 = vmatprep.subr.mxu0 0.0
            %1867 = vmatpush1.msra.mxu0 0.0
            %1868 = vmatprep.subr.mxu0 0.0
            %1869 = vmatpush1.msra.mxu0 0.0
            %1870 = vmatprep.subr.mxu0 0.0
            %1871 = vmatpush1.msra.mxu0 0.0
            %1872 = vmatprep.subr.mxu0 0.0
            %1873 = vmatpush1.msra.mxu0 0.0
            %1874 = vmatprep.subr.mxu0 0.0
            %1875 = vmatpush1.msra.mxu0 0.0
            %1876 = vmatprep.subr.mxu0 0.0
            %1877 = vmatpush1.msra.mxu0 0.0
            %1878 = vmatprep.subr.mxu0 0.0
            %1879 = vmatpush1.msra.mxu0 0.0
            %1880 = vmatprep.subr.mxu0 0.0
            %1881 = vmatpush1.msra.mxu0 0.0
            %1882 = vmatprep.subr.mxu0 0.0
            %1883 = vmatpush1.msra.mxu0 0.0
            %1884 = vmatprep.subr.mxu0 0.0
            %1885 = vmatpush1.msra.mxu0 0.0
            %1886 = vmatprep.subr.mxu0 0.0
            %1887 = vmatpush1.msra.mxu0 0.0
            %1888 = vmatprep.mubr.f32.mxu0 0.0
            %1889 = vmatmul.mubr.f32.gmra.mrb[0].mxu0 %v1822
            %v1890 = vpop.f32.mrb[0].mxu0
            %v1891 = vadd.f32 %v1819, %v1890
            %v1892 = vpop.f32.mrb[0].mxu0
            %1893 = vdwg.mxu0
            %v1894 = vmax.f32 %v1891, 0.0
            %v1895 = vld [vmem:[%s5] sm:$0xff]
            %v1896 = vld [vmem:[%s5 + $0x8] sm:$0xff]
            %v1897 = vld [vmem:[%s6] sm:$0xff]
            %v1898 = vld [vmem:[%s6 + $0x8] sm:$0xff]
            %v1900 = vsel %vm1820, %v1895, 0
            %v1903 = vsel %vm1820, %v1896, 0
            %1905 = vmatprep.subr.mxu0 0.0
            %1906 = vmatpush1.msra.mxu0 %v1894
            %1907 = vmatprep.subr.mxu0 0.0
            %1908 = vmatpush1.msra.mxu0 0.0
            %1909 = vmatprep.subr.mxu0 0.0
            %1910 = vmatpush1.msra.mxu0 0.0
            %1911 = vmatprep.subr.mxu0 0.0
            %1912 = vmatpush1.msra.mxu0 0.0
            %1913 = vmatprep.subr.mxu0 0.0
            %1914 = vmatpush1.msra.mxu0 0.0
            %1915 = vmatprep.subr.mxu0 0.0
            %1916 = vmatpush1.msra.mxu0 0.0
            %1917 = vmatprep.subr.mxu0 0.0
            %1918 = vmatpush1.msra.mxu0 0.0
            %1919 = vmatprep.subr.mxu0 0.0
            %1920 = vmatpush1.msra.mxu0 0.0
            %1921 = vmatprep.subr.mxu0 0.0
            %1922 = vmatpush1.msra.mxu0 0.0
            %1923 = vmatprep.subr.mxu0 0.0
            %1924 = vmatpush1.msra.mxu0 0.0
            %1925 = vmatprep.subr.mxu0 0.0
            %1926 = vmatpush1.msra.mxu0 0.0
            %1927 = vmatprep.subr.mxu0 0.0
            %1928 = vmatpush1.msra.mxu0 0.0
            %1929 = vmatprep.subr.mxu0 0.0
            %1930 = vmatpush1.msra.mxu0 0.0
            %1931 = vmatprep.subr.mxu0 0.0
            %1932 = vmatpush1.msra.mxu0 0.0
            %1933 = vmatprep.subr.mxu0 0.0
            %1934 = vmatpush1.msra.mxu0 0.0
            %1935 = vmatprep.subr.mxu0 0.0
            %1936 = vmatpush1.msra.mxu0 0.0
            %1937 = vmatprep.subr.mxu0 0.0
            %1938 = vmatpush1.msra.mxu0 0.0
            %1939 = vmatprep.subr.mxu0 0.0
            %1940 = vmatpush1.msra.mxu0 0.0
            %1941 = vmatprep.subr.mxu0 0.0
            %1942 = vmatpush1.msra.mxu0 0.0
            %1943 = vmatprep.subr.mxu0 0.0
            %1944 = vmatpush1.msra.mxu0 0.0
            %1945 = vmatprep.subr.mxu0 0.0
            %1946 = vmatpush1.msra.mxu0 0.0
            %1947 = vmatprep.subr.mxu0 0.0
            %1948 = vmatpush1.msra.mxu0 0.0
            %1949 = vmatprep.subr.mxu0 0.0
            %1950 = vmatpush1.msra.mxu0 0.0
            %1951 = vmatprep.subr.mxu0 0.0
            %1952 = vmatpush1.msra.mxu0 0.0
            %1953 = vmatprep.subr.mxu0 0.0
            %1954 = vmatpush1.msra.mxu0 0.0
            %1955 = vmatprep.subr.mxu0 0.0
            %1956 = vmatpush1.msra.mxu0 0.0
            %1957 = vmatprep.subr.mxu0 0.0
            %1958 = vmatpush1.msra.mxu0 0.0
            %1959 = vmatprep.subr.mxu0 0.0
            %1960 = vmatpush1.msra.mxu0 0.0
            %1961 = vmatprep.subr.mxu0 0.0
            %1962 = vmatpush1.msra.mxu0 0.0
            %1963 = vmatprep.subr.mxu0 0.0
            %1964 = vmatpush1.msra.mxu0 0.0
            %1965 = vmatprep.subr.mxu0 0.0
            %1966 = vmatpush1.msra.mxu0 0.0
            %1967 = vmatprep.subr.mxu0 0.0
            %1968 = vmatpush1.msra.mxu0 0.0
            %1969 = vmatprep.mubr.f32.mxu0 0.0
            %1970 = vmatmul.mubr.f32.gmra.mrb[0].mxu0 %v1900
            %v1971 = vpop.f32.mrb[0].mxu0
            %v1972 = vadd.f32 %v1897, %v1971
            %v1973 = vpop.f32.mrb[0].mxu0
            %1974 = vmatprep.mubr.f32.mxu0 0.0
            %1975 = vmatmul.mubr.f32.gmra.mrb[0].mxu0 %v1903
            %v1976 = vpop.f32.mrb[0].mxu0
            %v1977 = vadd.f32 %v1898, %v1976
            %v1978 = vpop.f32.mrb[0].mxu0
            %1979 = vdwg.mxu0
            %v1980 = vxor.u32 %v1972, 2147483648
            %v1981 = vmul.f32 %v1980, 1.442695
            %v1982 = vpow.pop %v1981
            %v1983 = vadd.f32 %v1982, 1.0
            %v1984 = vrcp.pop %v1983
            %v1985 = vmul.f32 1.0, %v1984
            %v1986 = vtanh.pop %v1977
            %v1987 = vadd.f32 %v1817, 1e-05
            %v1988 = vrsqrt.pop %v1987
            %v1989 = vmul.f32 %v1985, %v1988
            %1990 = vst.msk [vmem:[#allocation4] sm:$0xff] %vm1768, %v1989
            %v1991 = vmul.f32 %v1812, %v1989
            %v1992 = vsub.f32 %v1986, %v1991
            %1993 = vst.msk [vmem:[#allocation4 + $0x8] sm:$0xff] %vm1768, %v1992
          $region64: #{tpu_custom_call.1} parent=55 // pred_fallthru
            _
        $region56: #{tpu_custom_call.1} parent=47 // pred_fallthru
          _
        %p1994 = scmp.eq.s32.totalorder %s30, 1
        // Predicated region
        $region65: #{tpu_custom_call.1} parent=47 // pred_check
          %p1995 = pneg %p1994
        $region66: #{tpu_custom_call.1} parent=47 // pred_check_branch
          %1997 = sbr.rel (%p1995) target = $region68
        $region67: #{tpu_custom_call.1} parent=47 // pred_region
          %v1998 = vld [vmem:[#allocation4] sm:$0xff]
          %2000 = vset.pattern.permute.xlu0 0
          %2001 = vperm.xlu0 %2000, %v1998
          %v2002 = vpop.permute.xlu0 %2001
          %v2004 = vmul.f32 %v1585, %v2002
          %v2005 = vmul.f32 %v1586, %v2002
          %v2006 = vmul.f32 %v1587, %v2002
          %v2007 = vmul.f32 %v1588, %v2002
          %v2008 = vmul.f32 %v1589, %v2002
          %v2009 = vmul.f32 %v1590, %v2002
          %v2010 = vmul.f32 %v1591, %v2002
          %v2011 = vmul.f32 %v1592, %v2002
          %v2012 = vmul.f32 %v1593, %v2002
          %v2013 = vmul.f32 %v1594, %v2002
          %v2014 = vmul.f32 %v1595, %v2002
          %v2015 = vmul.f32 %v1596, %v2002
          %v2016 = vmul.f32 %v1597, %v2002
          %v2017 = vmul.f32 %v1598, %v2002
          %v2018 = vmul.f32 %v1599, %v2002
          %v2019 = vmul.f32 %v1600, %v2002
          %v2020 = vmul.f32 %v1601, %v2002
          %v2021 = vmul.f32 %v1602, %v2002
          %v2022 = vmul.f32 %v1603, %v2002
          %v2023 = vmul.f32 %v1604, %v2002
          %v2024 = vmul.f32 %v1605, %v2002
          %v2025 = vmul.f32 %v1606, %v2002
          %v2026 = vmul.f32 %v1607, %v2002
          %v2027 = vmul.f32 %v1608, %v2002
          %v2028 = vmul.f32 %v1609, %v2002
          %v2029 = vmul.f32 %v1610, %v2002
          %v2030 = vmul.f32 %v1611, %v2002
          %v2031 = vmul.f32 %v1612, %v2002
          %v2032 = vmul.f32 %v1613, %v2002
          %v2033 = vmul.f32 %v1614, %v2002
          %v2034 = vmul.f32 %v1615, %v2002
          %v2035 = vmul.f32 %v1616, %v2002
          %v2036 = vld [vmem:[#allocation4 + $0x8] sm:$0xff]
          %2038 = vset.pattern.permute.xlu0 0
          %2039 = vperm.xlu0 %2038, %v2036
          %v2040 = vpop.permute.xlu0 %2039
          %v2042 = vadd.f32 %v2004, %v2040
          %v2043 = vadd.f32 %v2005, %v2040
          %v2044 = vadd.f32 %v2006, %v2040
          %v2045 = vadd.f32 %v2007, %v2040
          %v2046 = vadd.f32 %v2008, %v2040
          %v2047 = vadd.f32 %v2009, %v2040
          %v2048 = vadd.f32 %v2010, %v2040
          %v2049 = vadd.f32 %v2011, %v2040
          %v2050 = vadd.f32 %v2012, %v2040
          %v2051 = vadd.f32 %v2013, %v2040
          %v2052 = vadd.f32 %v2014, %v2040
          %v2053 = vadd.f32 %v2015, %v2040
          %v2054 = vadd.f32 %v2016, %v2040
          %v2055 = vadd.f32 %v2017, %v2040
          %v2056 = vadd.f32 %v2018, %v2040
          %v2057 = vadd.f32 %v2019, %v2040
          %v2058 = vadd.f32 %v2020, %v2040
          %v2059 = vadd.f32 %v2021, %v2040
          %v2060 = vadd.f32 %v2022, %v2040
          %v2061 = vadd.f32 %v2023, %v2040
          %v2062 = vadd.f32 %v2024, %v2040
          %v2063 = vadd.f32 %v2025, %v2040
          %v2064 = vadd.f32 %v2026, %v2040
          %v2065 = vadd.f32 %v2027, %v2040
          %v2066 = vadd.f32 %v2028, %v2040
          %v2067 = vadd.f32 %v2029, %v2040
          %v2068 = vadd.f32 %v2030, %v2040
          %v2069 = vadd.f32 %v2031, %v2040
          %v2070 = vadd.f32 %v2032, %v2040
          %v2071 = vadd.f32 %v2033, %v2040
          %v2072 = vadd.f32 %v2034, %v2040
          %v2073 = vadd.f32 %v2035, %v2040
          %2074 = vst [vmem:[%s317] sm:$0xff] %v2042
          %2075 = vst [vmem:[%s317 + $0x8] sm:$0xff] %v2043
          %2076 = vst [vmem:[%s317 + $0x10] sm:$0xff] %v2044
          %2077 = vst [vmem:[%s317 + $0x18] sm:$0xff] %v2045
          %2078 = vst [vmem:[%s317 + $0x20] sm:$0xff] %v2046
          %2079 = vst [vmem:[%s317 + $0x28] sm:$0xff] %v2047
          %2080 = vst [vmem:[%s317 + $0x30] sm:$0xff] %v2048
          %2081 = vst [vmem:[%s317 + $0x38] sm:$0xff] %v2049
          %2082 = vst [vmem:[%s317 + $0x40] sm:$0xff] %v2050
          %2083 = vst [vmem:[%s317 + $0x48] sm:$0xff] %v2051
          %2084 = vst [vmem:[%s317 + $0x50] sm:$0xff] %v2052
          %2085 = vst [vmem:[%s317 + $0x58] sm:$0xff] %v2053
          %2086 = vst [vmem:[%s317 + $0x60] sm:$0xff] %v2054
          %2087 = vst [vmem:[%s317 + $0x68] sm:$0xff] %v2055
          %2088 = vst [vmem:[%s317 + $0x70] sm:$0xff] %v2056
          %2089 = vst [vmem:[%s317 + $0x78] sm:$0xff] %v2057
          %2090 = vst [vmem:[%s317 + $0x80] sm:$0xff] %v2058
          %2091 = vst [vmem:[%s317 + $0x88] sm:$0xff] %v2059
          %2092 = vst [vmem:[%s317 + $0x90] sm:$0xff] %v2060
          %2093 = vst [vmem:[%s317 + $0x98] sm:$0xff] %v2061
          %2094 = vst [vmem:[%s317 + $0xa0] sm:$0xff] %v2062
          %2095 = vst [vmem:[%s317 + $0xa8] sm:$0xff] %v2063
          %2096 = vst [vmem:[%s317 + $0xb0] sm:$0xff] %v2064
          %2097 = vst [vmem:[%s317 + $0xb8] sm:$0xff] %v2065
          %2098 = vst [vmem:[%s317 + $0xc0] sm:$0xff] %v2066
          %2099 = vst [vmem:[%s317 + $0xc8] sm:$0xff] %v2067
          %2100 = vst [vmem:[%s317 + $0xd0] sm:$0xff] %v2068
          %2101 = vst [vmem:[%s317 + $0xd8] sm:$0xff] %v2069
          %2102 = vst [vmem:[%s317 + $0xe0] sm:$0xff] %v2070
          %2103 = vst [vmem:[%s317 + $0xe8] sm:$0xff] %v2071
          %2104 = vst [vmem:[%s317 + $0xf0] sm:$0xff] %v2072
          %2105 = vst [vmem:[%s317 + $0xf8] sm:$0xff] %v2073
        $region68: #{tpu_custom_call.1} parent=47 // pred_fallthru
          _
        %s2106 = sand.u32 %s207, 1
        %s2107 = scalar_lea.sflag [#allocation7], %s2106
        %s2108 = sand.u32 %s207, 1
        %s2109 = smul.addr %s2108, 256
        %s2110 = scalar_lea.vmem [#allocation8], %s2109
        // Predicated region
        $region69: #{tpu_custom_call.1} parent=47 // pred_check
          %p2111 = pneg %p217
        $region70: #{tpu_custom_call.1} parent=47 // pred_check_branch
          %2113 = sbr.rel (%p2111) target = $region72
        $region71: #{tpu_custom_call.1} parent=47 // pred_region
          %s2114 = smul.u32 %s30, %s31
          %s2115 = smul.u32 32, %s2114
          %s2117 = ssub.s32 4096, 4096
          %2118 = vsyncadd %s2107, %s2117
          %s2119 = smul.addr %s29, 32
          %s2120 = sadd.s32 %s2115, %s2119
          %s2121 = smul.addr %s2120, 128
          %s2122 = scalar_lea.hbm %s7, %s2121
          %s2124 = sshll.u32 %s2110, 4
          %s2125 = int_to_ptr.vmem [resolvable:$true] %s2124
          %2127 = dma.vmem_to_hbm [thread:$0]  %s2125, 4096, %s2122, %s2107
        $region72: #{tpu_custom_call.1} parent=47 // pred_fallthru
          _
      $region48: #{tpu_custom_call.1} parent=5 // pred_fallthru
        _
      %p2128 = scmp.le.s32.totalorder 2, %s19
      // Predicated region
      $region73: #{tpu_custom_call.1} parent=5 // pred_check
        %p2129 = pneg %p2128
      $region74: #{tpu_custom_call.1} parent=5 // pred_check_branch
        %2131 = sbr.rel (%p2129) target = $region76
      $region75: #{tpu_custom_call.1} parent=5 // pred_region
        %s2132 = ssub.s32 %s19, 2
        // Predicated region
        $region77: #{tpu_custom_call.1} parent=75 // pred_check
          %p2133 = pneg %p223
        $region78: #{tpu_custom_call.1} parent=75 // pred_check_branch
          %2135 = sbr.rel (%p2133) target = $region80
        $region79: #{tpu_custom_call.1} parent=75 // pred_region
          %s2136 = sand.u32 %s208, 1
          %s2137 = scalar_lea.sflag [#allocation7], %s2136
          %s2138 = sand.u32 %s208, 1
          %s2139 = smul.addr %s2138, 256
          %s2140 = scalar_lea.vmem [#allocation8], %s2139
          %2141 = dma.done %s2137, 4096
        $region80: #{tpu_custom_call.1} parent=75 // pred_fallthru
          _
      $region76: #{tpu_custom_call.1} parent=5 // pred_fallthru
        _
    $region6: #{tpu_custom_call.1} parent=1 // loop_footer
      %s23 = sadd.s32 1, %s19
    $region7: #{tpu_custom_call.1} parent=1 // loop_footer_branch
      %18 = sbr.rel target = $region3
    $region8: #{tpu_custom_call.1} parent=1 // loop_exit
      _
    %2142 = vsyncpa [#allocation6], 1
    %s2143 = scalar_lea.sflag [#allocation6], 1
    %2144 = vsyncpa %s2143, 1
    %2145 = vsyncpa [#allocation7], 1
    %s2146 = scalar_lea.sflag [#allocation7], 1
    %2147 = vsyncpa %s2146, 1

</llo_original>
